<compile_context>
chip_gen: v5e
topology: v5e:2x2
jax: 0.10.0
libtpu: 0.0.40
codegen_flags: <defaults>
</compile_context>

<pallas_src>
import jax
import jax.numpy as jnp
from jax import lax
from jax.experimental import pallas as pl
from jax.experimental.pallas import tpu as pltpu

NUM_FEATURES = 80
HIDDEN = NUM_FEATURES * 8  # 640


def bottleneck_kernel(x_ref, w1_ref, b1_ref, w2_ref, b2_ref, o_ref):
    # First layer:  h = relu(x @ W1.T + b1)
    # x: (bm, 640) bf16, W1: (640, 640) bf16 (out, in)  ->  (bm, 640) f32
    h = lax.dot_general(
        x_ref[...], w1_ref[...],
        dimension_numbers=(((1,), (1,)), ((), ())),
        preferred_element_type=jnp.float32)
    h = jnp.maximum(h + b1_ref[...], 0.0)

    # Second layer:  y = relu(h @ W2.T + b2)
    # h: (bm, 640) bf16, W2: (640, 640) bf16 (out, in)  ->  (bm, 640) f32
    y = lax.dot_general(
        h.astype(jnp.bfloat16), w2_ref[...],
        dimension_numbers=(((1,), (1,)), ((), ())),
        preferred_element_type=jnp.float32)
    o_ref[...] = jnp.maximum(y + b2_ref[...], 0.0).astype(o_ref.dtype)


def bottleneck_pallas(x2d, w1, b1, w2, b2, *, bm_cap=256):
    """y = relu(relu(x @ W1.T + b1) @ W2.T + b2); W1, W2 in (out, in) layout (bf16)."""
    B, F = x2d.shape
    assert w1.shape == (F, F) and w2.shape == (F, F)

    # Pad batch to a multiple of 16 rows: bf16 packs two rows per sublane, so a
    # 16-row block is a clean full (16,128) bf16 tile (padded rows sliced off).
    Bp = ((B + 15) // 16) * 16

    # Batch tile: one tile for small batches, capped at 256 (MXU row width on
    # v6e/v7x; plenty for v5e's 128 too) so the block never scales unboundedly.
    bm = Bp if Bp <= bm_cap else bm_cap
    Bp = ((Bp + bm - 1) // bm) * bm                 # make Bp a multiple of bm
    if Bp != B:
        x2d = jnp.pad(x2d, ((0, Bp - B), (0, 0)))
    x2d = x2d.astype(jnp.bfloat16)

    b1r = b1.reshape(1, F).astype(jnp.float32)
    b2r = b2.reshape(1, F).astype(jnp.float32)

    # VMEM budget sanity check (double-buffered inputs + output block).
    block_bytes = 2 * (bm * F * 2            # x bf16
                       + 2 * F * F * 2       # W1 + W2 bf16
                       + 2 * F * 4           # biases f32
                       + bm * F * 4)         # output f32
    assert block_bytes < 30 * 1024 * 1024, f"blocks would not fit VMEM: {block_bytes}"

    flops = 2 * 2 * Bp * F * F                              # two 640x640 matmuls
    bytes_accessed = (2 * F * F * 2 + 2 * F * 4             # weights + biases
                      + Bp * F * 2 + Bp * F * 4)            # x in, y out

    out = pl.pallas_call(
        bottleneck_kernel,
        out_shape=jax.ShapeDtypeStruct((Bp, F), jnp.float32),
        grid=(Bp // bm,),
        in_specs=[
            pl.BlockSpec((bm, F), lambda i: (i, 0)),   # x            (bf16)
            pl.BlockSpec((F, F), lambda i: (0, 0)),    # W1 full      (bf16, (out,in))
            pl.BlockSpec((1, F), lambda i: (0, 0)),    # b1 full      (f32)
            pl.BlockSpec((F, F), lambda i: (0, 0)),    # W2 full      (bf16, (out,in))
            pl.BlockSpec((1, F), lambda i: (0, 0)),    # b2 full      (f32)
        ],
        out_specs=pl.BlockSpec((bm, F), lambda i: (i, 0)),
        compiler_params=pltpu.CompilerParams(
            dimension_semantics=("parallel",)),
        cost_estimate=pl.CostEstimate(
            flops=flops, transcendentals=0, bytes_accessed=bytes_accessed),
    )(x2d, w1, b1r, w2, b2r)

    return out[:B]


def init_params(key):
    """PyTorch-default-style init; weights stored once in bf16 (out, in) layout."""
    k1, k2, k3, k4 = jax.random.split(key, 4)
    bound = 1.0 / jnp.sqrt(HIDDEN)
    w1 = jax.random.uniform(k1, (HIDDEN, HIDDEN), jnp.float32, -bound, bound)
    b1 = jax.random.uniform(k2, (HIDDEN,), jnp.float32, -bound, bound)
    w2 = jax.random.uniform(k3, (HIDDEN, HIDDEN), jnp.float32, -bound, bound)
    b2 = jax.random.uniform(k4, (HIDDEN,), jnp.float32, -bound, bound)
    # bf16 weight storage halves the per-call HBM weight traffic (the roofline
    # floor); accumulation stays f32 in-kernel.  Deviates slightly from a pure
    # f32 PyTorch Linear (intentional tradeoff).
    return {"w1": w1.astype(jnp.bfloat16), "b1": b1,
            "w2": w2.astype(jnp.bfloat16), "b2": b2}


def threedepn_forward(x, params):
    b = x.shape[0]
    x2d = x.reshape(b, -1)                                   # x_e4.view(b, -1)
    y = bottleneck_pallas(x2d, params["w1"], params["b1"],
                          params["w2"], params["b2"])        # self.bottleneck(x)
    y = y.reshape(y.shape[0], y.shape[1], 1, 1, 1)           # view(b, C, 1, 1, 1)
    # torch.squeeze(x, dim=1) only removes dim 1 if it has size 1 (no-op here).
    if y.shape[1] == 1:
        y = jnp.squeeze(y, axis=1)
    return y


def reference_forward(x, params):
    """Pure-JAX mirror (same bf16-weight / f32-accumulation semantics)."""
    b = x.shape[0]
    x2d = x.reshape(b, -1).astype(jnp.bfloat16)
    h = lax.dot_general(x2d, params["w1"],
                        dimension_numbers=(((1,), (1,)), ((), ())),
                        preferred_element_type=jnp.float32)
    h = jnp.maximum(h + params["b1"], 0.0).astype(jnp.bfloat16)
    y = lax.dot_general(h, params["w2"],
                        dimension_numbers=(((1,), (1,)), ((), ())),
                        preferred_element_type=jnp.float32)
    y = jnp.maximum(y + params["b2"], 0.0)
    y = y.reshape(y.shape[0], y.shape[1], 1, 1, 1)
    if y.shape[1] == 1:
        y = jnp.squeeze(y, axis=1)
    return y


if __name__ == "__main__":
    key = jax.random.PRNGKey(0)
    kp, kx = jax.random.split(key)
    params = init_params(kp)

    batch = 2
    # Input = encoder feature volume (b, num_features*8, 1, 1, 1)
    x = jax.random.normal(kx, (batch, HIDDEN, 1, 1, 1), jnp.float32)

    out = threedepn_forward(x, params)
    out = jax.block_until_ready(out)

    ref = reference_forward(x, params)
    assert out.shape == (batch, HIDDEN, 1, 1, 1), out.shape
    assert jnp.allclose(out, ref, atol=1e-4, rtol=1e-4), "mismatch vs JAX reference"

    print("KERNEL_OK")
</pallas_src>

<mosaic_0001>
module attributes {stable_mosaic.version = 11 : i64} {
  func.func @bottleneck_kernel(%arg0: i32, %arg1: memref<16x640xbf16, #tpu.memory_space<vmem>>, %arg2: memref<640x640xbf16, #tpu.memory_space<vmem>>, %arg3: memref<1x640xf32, #tpu.memory_space<vmem>>, %arg4: memref<640x640xbf16, #tpu.memory_space<vmem>>, %arg5: memref<1x640xf32, #tpu.memory_space<vmem>>, %arg6: memref<16x640xf32, #tpu.memory_space<vmem>>) attributes {dimension_semantics = [#tpu.dimension_semantics<parallel>], iteration_bounds = array<i64: 1>, scalar_prefetch = 0 : i64, scratch_operands = 0 : i64, tpu.core_type = #tpu.core_type<tc>, window_params = [{transform_indices = @transform_0, window_bounds = array<i64: 16, 640>}, {pipeline_mode = #tpu.pipeline_mode<synchronous>, transform_indices = @transform_1, window_bounds = array<i64: 640, 640>}, {pipeline_mode = #tpu.pipeline_mode<synchronous>, transform_indices = @transform_2, window_bounds = array<i64: 1, 640>}, {pipeline_mode = #tpu.pipeline_mode<synchronous>, transform_indices = @transform_3, window_bounds = array<i64: 640, 640>}, {pipeline_mode = #tpu.pipeline_mode<synchronous>, transform_indices = @transform_4, window_bounds = array<i64: 1, 640>}, {transform_indices = @transform_5, window_bounds = array<i64: 16, 640>}]} {
    %c0 = arith.constant 0 : index
    %c0_0 = arith.constant 0 : index
    %0 = vector.load %arg1[%c0, %c0_0] : memref<16x640xbf16, #tpu.memory_space<vmem>>, vector<16x640xbf16>
    %c0_1 = arith.constant 0 : index
    %c0_2 = arith.constant 0 : index
    %1 = vector.load %arg2[%c0_1, %c0_2] : memref<640x640xbf16, #tpu.memory_space<vmem>>, vector<640x640xbf16>
    %cst = arith.constant dense<0.000000e+00> : vector<16x640xf32>
    %2 = tpu.matmul %0, %1, %cst {dimension_numbers = #tpu.dot_dimension_numbers<[1], [1], [0], [0], [0, 0, 1, 0], [], []>} : vector<16x640xbf16>, vector<640x640xbf16>, vector<16x640xf32> -> vector<16x640xf32>
    %c0_3 = arith.constant 0 : index
    %c0_4 = arith.constant 0 : index
    %3 = vector.load %arg3[%c0_3, %c0_4] : memref<1x640xf32, #tpu.memory_space<vmem>>, vector<1x640xf32>
    %4 = vector.broadcast %3 : vector<1x640xf32> to vector<16x640xf32>
    %5 = arith.addf %2, %4 : vector<16x640xf32>
    %cst_5 = arith.constant 0.000000e+00 : f32
    %6 = vector.broadcast %cst_5 : f32 to vector<16x640xf32>
    %7 = arith.maximumf %5, %6 : vector<16x640xf32>
    %8 = arith.truncf %7 : vector<16x640xf32> to vector<16x640xbf16>
    %c0_6 = arith.constant 0 : index
    %c0_7 = arith.constant 0 : index
    %9 = vector.load %arg4[%c0_6, %c0_7] : memref<640x640xbf16, #tpu.memory_space<vmem>>, vector<640x640xbf16>
    %cst_8 = arith.constant dense<0.000000e+00> : vector<16x640xf32>
    %10 = tpu.matmul %8, %9, %cst_8 {dimension_numbers = #tpu.dot_dimension_numbers<[1], [1], [0], [0], [0, 0, 1, 0], [], []>} : vector<16x640xbf16>, vector<640x640xbf16>, vector<16x640xf32> -> vector<16x640xf32>
    %c0_9 = arith.constant 0 : index
    %c0_10 = arith.constant 0 : index
    %11 = vector.load %arg5[%c0_9, %c0_10] : memref<1x640xf32, #tpu.memory_space<vmem>>, vector<1x640xf32>
    %12 = vector.broadcast %11 : vector<1x640xf32> to vector<16x640xf32>
    %13 = arith.addf %10, %12 : vector<16x640xf32>
    %cst_11 = arith.constant 0.000000e+00 : f32
    %14 = vector.broadcast %cst_11 : f32 to vector<16x640xf32>
    %15 = arith.maximumf %13, %14 : vector<16x640xf32>
    %c0_12 = arith.constant 0 : index
    %c0_13 = arith.constant 0 : index
    %16 = vector.load %arg6[%c0_12, %c0_13] : memref<16x640xf32, #tpu.memory_space<vmem>>, vector<16x640xf32>
    tpu.vector_store %arg6[%c0_12, %c0_13], %15 {strides = array<i32>} : memref<16x640xf32, #tpu.memory_space<vmem>>, vector<16x640xf32>,
    return
  }
  func.func @transform_0(%arg0: i32) -> (i32, i32) {
    %c0_i32 = arith.constant 0 : i32
    %c0_i32_0 = arith.constant 0 : i32
    return %arg0, %c0_i32 : i32, i32
  }
  func.func @transform_1(%arg0: i32) -> (i32, i32) {
    %c0_i32 = arith.constant 0 : i32
    %c0_i32_0 = arith.constant 0 : i32
    %c0_i32_1 = arith.constant 0 : i32
    return %c0_i32, %c0_i32_0 : i32, i32
  }
  func.func @transform_2(%arg0: i32) -> (i32, i32) {
    %c0_i32 = arith.constant 0 : i32
    %c0_i32_0 = arith.constant 0 : i32
    %c0_i32_1 = arith.constant 0 : i32
    return %c0_i32, %c0_i32_0 : i32, i32
  }
  func.func @transform_3(%arg0: i32) -> (i32, i32) {
    %c0_i32 = arith.constant 0 : i32
    %c0_i32_0 = arith.constant 0 : i32
    %c0_i32_1 = arith.constant 0 : i32
    return %c0_i32, %c0_i32_0 : i32, i32
  }
  func.func @transform_4(%arg0: i32) -> (i32, i32) {
    %c0_i32 = arith.constant 0 : i32
    %c0_i32_0 = arith.constant 0 : i32
    %c0_i32_1 = arith.constant 0 : i32
    return %c0_i32, %c0_i32_0 : i32, i32
  }
  func.func @transform_5(%arg0: i32) -> (i32, i32) {
    %c0_i32 = arith.constant 0 : i32
    %c0_i32_0 = arith.constant 0 : i32
    return %arg0, %c0_i32 : i32, i32
  }
}

</mosaic_0001>

<llo_original>
// kernel: tpu_custom_call.1
$region0: #{tpu_custom_call.1}
  #allocation0 [shape = 'u32[]', space=smem, size = 0x4, offset = 0x4, fixed_abs, tag = 'smem constant byte address 0x4 - core index']
  #allocation1 [shape = 'u32[72,128]{1,0:T(1,128)}', space=vmem, size = 0x9000, scoped, tag = 'internal scratch']
  %s0 = inlined_call_operand.hbm [shape: bf16[16,640], index: 0, kind: input, shape index: {}]
  %s1 = inlined_call_operand.hbm [shape: bf16[640,640], index: 1, kind: input, shape index: {}]
  %s2 = inlined_call_operand.hbm [shape: f32[1,640], index: 2, kind: input, shape index: {}]
  %s3 = inlined_call_operand.hbm [shape: bf16[640,640], index: 3, kind: input, shape index: {}]
  %s4 = inlined_call_operand.hbm [shape: f32[1,640], index: 4, kind: input, shape index: {}]
  %s5 = inlined_call_operand.hbm [shape: f32[16,640], index: 5, kind: output, shape index: {}]
  %s6 = sld [smem:[#allocation0]]
  $region50: #{tpu_custom_call.1} parent=0
    _
  %s8 = ssub.s32 1, %s6
  %s9 = scalar_select 0, %s8, %s6
  $region1: #{tpu_custom_call.1} parent=0
    #allocation2 [shape = 'u8[20480]{0}', space=vmem, size = 0x5000, scoped, tag = 'input window, operand 0, single buffered']
    #allocation3 [shape = 's32[1]{0}', space=sflag, size = 0x4, scoped, tag = 'scoped memory for tpu_custom_call.1']
    #allocation4 [shape = 's32[1]{0}', space=sflag, size = 0x4, scoped, tag = 'scoped memory for tpu_custom_call.1']
    #allocation5 [shape = 'u8[819200]{0}', space=vmem, size = 0xc8000, scoped, tag = 'input window, operand 1, single buffered']
    #allocation6 [shape = 's32[1]{0}', space=sflag, size = 0x4, scoped, tag = 'scoped memory for tpu_custom_call.1']
    #allocation7 [shape = 'u8[2560]{0}', space=vmem, size = 0xc00, scoped, tag = 'input window, operand 2, single buffered']
    #allocation8 [shape = 'u8[819200]{0}', space=vmem, size = 0xc8000, scoped, tag = 'input window, operand 3, single buffered']
    #allocation9 [shape = 's32[1]{0}', space=sflag, size = 0x4, scoped, tag = 'scoped memory for tpu_custom_call.1']
    #allocation10 [shape = 'u8[2560]{0}', space=vmem, size = 0xc00, scoped, tag = 'input window, operand 4, single buffered']
    #allocation11 [shape = 'u8[40960]{0}', space=vmem, size = 0xa000, scoped, tag = 'output window, operand 0, single buffered']
    %10 = vsyncpa [#allocation3], 0
    %11 = vsyncpa [#allocation6], 0
    %12 = vsyncpa [#allocation9], 0
    %13 = vsyncpa [#allocation4], 0
    // Predicated region
    $region2: #{tpu_custom_call.1} parent=1 // pred_check
      _
    $region3: #{tpu_custom_call.1} parent=1 // pred_check_branch
      %15 = sbr.rel (0) target = $region5
    $region4: #{tpu_custom_call.1} parent=1 // pred_region
      %17 = vsyncadd [#allocation3], 0
      %s18 = sshll.u32 %s0, 4
      %s19 = int_to_ptr.hbm [resolvable:$true] %s18
      %s20 = sshll.u32 [#allocation2], 4
      %s21 = int_to_ptr.vmem [resolvable:$true] %s20
      %26 = dma.hbm_to_vmem [thread:$0]  %s19, 640, %s21, [#allocation3], 320, 320, 20
    $region5: #{tpu_custom_call.1} parent=1 // pred_fallthru
      _
    // Predicated region
    $region6: #{tpu_custom_call.1} parent=1 // pred_check
      _
    $region7: #{tpu_custom_call.1} parent=1 // pred_check_branch
      %28 = sbr.rel (0) target = $region9
    $region8: #{tpu_custom_call.1} parent=1 // pred_region
      %30 = vsyncadd [#allocation6], 0
      %s31 = sshll.u32 %s1, 4
      %s32 = int_to_ptr.hbm [resolvable:$true] %s31
      %s33 = sshll.u32 [#allocation5], 4
      %s34 = int_to_ptr.vmem [resolvable:$true] %s33
      %39 = dma.hbm_to_vmem [thread:$0]  %s32, 25600, %s34, [#allocation6], 320, 320, 20
    $region9: #{tpu_custom_call.1} parent=1 // pred_fallthru
      _
    // Predicated region
    $region10: #{tpu_custom_call.1} parent=1 // pred_check
      _
    $region11: #{tpu_custom_call.1} parent=1 // pred_check_branch
      %41 = sbr.rel (0) target = $region13
    $region12: #{tpu_custom_call.1} parent=1 // pred_region
      %43 = vsyncadd [#allocation6], 0
      %s45 = sshll.u32 %s2, 4
      %s46 = int_to_ptr.hbm [resolvable:$true] %s45
      %s47 = sshll.u32 [#allocation7], 4
      %s48 = int_to_ptr.vmem [resolvable:$true] %s47
      %50 = dma.hbm_to_vmem [thread:$0]  %s46, 80, %s48, [#allocation6]
    $region13: #{tpu_custom_call.1} parent=1 // pred_fallthru
      _
    // Predicated region
    $region14: #{tpu_custom_call.1} parent=1 // pred_check
      _
    $region15: #{tpu_custom_call.1} parent=1 // pred_check_branch
      %52 = sbr.rel (0) target = $region17
    $region16: #{tpu_custom_call.1} parent=1 // pred_region
      %54 = vsyncadd [#allocation9], 0
      %s55 = sshll.u32 %s3, 4
      %s56 = int_to_ptr.hbm [resolvable:$true] %s55
      %s57 = sshll.u32 [#allocation8], 4
      %s58 = int_to_ptr.vmem [resolvable:$true] %s57
      %63 = dma.hbm_to_vmem [thread:$0]  %s56, 25600, %s58, [#allocation9], 320, 320, 20
    $region17: #{tpu_custom_call.1} parent=1 // pred_fallthru
      _
    // Predicated region
    $region18: #{tpu_custom_call.1} parent=1 // pred_check
      _
    $region19: #{tpu_custom_call.1} parent=1 // pred_check_branch
      %65 = sbr.rel (0) target = $region21
    $region20: #{tpu_custom_call.1} parent=1 // pred_region
      %67 = vsyncadd [#allocation9], 0
      %s69 = sshll.u32 %s4, 4
      %s70 = int_to_ptr.hbm [resolvable:$true] %s69
      %s71 = sshll.u32 [#allocation10], 4
      %s72 = int_to_ptr.vmem [resolvable:$true] %s71
      %74 = dma.hbm_to_vmem [thread:$0]  %s70, 80, %s72, [#allocation9]
    $region21: #{tpu_custom_call.1} parent=1 // pred_fallthru
      _
    // Predicated region
    $region22: #{tpu_custom_call.1} parent=1 // pred_check
      _
    $region23: #{tpu_custom_call.1} parent=1 // pred_check_branch
      %76 = sbr.rel (0) target = $region25
    $region24: #{tpu_custom_call.1} parent=1 // pred_region
      %78 = dma.done [#allocation3], 640
    $region25: #{tpu_custom_call.1} parent=1 // pred_fallthru
      _
    // Predicated region
    $region26: #{tpu_custom_call.1} parent=1 // pred_check
      _
    $region27: #{tpu_custom_call.1} parent=1 // pred_check_branch
      %80 = sbr.rel (0) target = $region29
    $region28: #{tpu_custom_call.1} parent=1 // pred_region
      %82 = dma.done [#allocation6], 25600
    $region29: #{tpu_custom_call.1} parent=1 // pred_fallthru
      _
    // Predicated region
    $region30: #{tpu_custom_call.1} parent=1 // pred_check
      _
    $region31: #{tpu_custom_call.1} parent=1 // pred_check_branch
      %84 = sbr.rel (0) target = $region33
    $region32: #{tpu_custom_call.1} parent=1 // pred_region
      %86 = dma.done [#allocation6], 80
    $region33: #{tpu_custom_call.1} parent=1 // pred_fallthru
      _
    // Predicated region
    $region34: #{tpu_custom_call.1} parent=1 // pred_check
      _
    $region35: #{tpu_custom_call.1} parent=1 // pred_check_branch
      %88 = sbr.rel (0) target = $region37
    $region36: #{tpu_custom_call.1} parent=1 // pred_region
      %90 = dma.done [#allocation9], 25600
    $region37: #{tpu_custom_call.1} parent=1 // pred_fallthru
      _
    // Predicated region
    $region38: #{tpu_custom_call.1} parent=1 // pred_check
      _
    $region39: #{tpu_custom_call.1} parent=1 // pred_check_branch
      %92 = sbr.rel (0) target = $region41
    $region40: #{tpu_custom_call.1} parent=1 // pred_region
      %94 = dma.done [#allocation9], 80
    $region41: #{tpu_custom_call.1} parent=1 // pred_fallthru
      _
    %v95 = vld [vmem:[#allocation2] sm:$0xff]
    %v96 = vld [vmem:[#allocation2 + $0x8] sm:$0xff]
    %v97 = vld [vmem:[#allocation2 + $0x10] sm:$0xf]
    %v98 = vld [vmem:[#allocation2 + $0x14] sm:$0xff]
    %v99 = vld [vmem:[#allocation2 + $0x1c] sm:$0xff]
    %v100 = vld [vmem:[#allocation2 + $0x24] sm:$0xf]
    %v101 = vld [vmem:[#allocation5] sm:$0xff]
    %v102 = vld [vmem:[#allocation5 + $0x8] sm:$0xff]
    %v103 = vld [vmem:[#allocation5 + $0x10] sm:$0xf]
    %v104 = vld [vmem:[#allocation5 + $0x14] sm:$0xff]
    %v105 = vld [vmem:[#allocation5 + $0x1c] sm:$0xff]
    %v106 = vld [vmem:[#allocation5 + $0x24] sm:$0xf]
    %v107 = vld [vmem:[#allocation5 + $0x28] sm:$0xff]
    %v108 = vld [vmem:[#allocation5 + $0x30] sm:$0xff]
    %v109 = vld [vmem:[#allocation5 + $0x38] sm:$0xf]
    %v110 = vld [vmem:[#allocation5 + $0x3c] sm:$0xff]
    %v111 = vld [vmem:[#allocation5 + $0x44] sm:$0xff]
    %v112 = vld [vmem:[#allocation5 + $0x4c] sm:$0xf]
    %v113 = vld [vmem:[#allocation5 + $0x50] sm:$0xff]
    %v114 = vld [vmem:[#allocation5 + $0x58] sm:$0xff]
    %v115 = vld [vmem:[#allocation5 + $0x60] sm:$0xf]
    %v116 = vld [vmem:[#allocation5 + $0x64] sm:$0xff]
    %v117 = vld [vmem:[#allocation5 + $0x6c] sm:$0xff]
    %v118 = vld [vmem:[#allocation5 + $0x74] sm:$0xf]
    %v119 = vld [vmem:[#allocation5 + $0x78] sm:$0xff]
    %v120 = vld [vmem:[#allocation5 + $0x80] sm:$0xff]
    %v121 = vld [vmem:[#allocation5 + $0x88] sm:$0xf]
    %v122 = vld [vmem:[#allocation5 + $0x8c] sm:$0xff]
    %v123 = vld [vmem:[#allocation5 + $0x94] sm:$0xff]
    %v124 = vld [vmem:[#allocation5 + $0x9c] sm:$0xf]
    %v125 = vld [vmem:[#allocation5 + $0xa0] sm:$0xff]
    %v126 = vld [vmem:[#allocation5 + $0xa8] sm:$0xff]
    %v127 = vld [vmem:[#allocation5 + $0xb0] sm:$0xf]
    %v128 = vld [vmem:[#allocation5 + $0xb4] sm:$0xff]
    %v129 = vld [vmem:[#allocation5 + $0xbc] sm:$0xff]
    %v130 = vld [vmem:[#allocation5 + $0xc4] sm:$0xf]
    %v131 = vld [vmem:[#allocation5 + $0xc8] sm:$0xff]
    %v132 = vld [vmem:[#allocation5 + $0xd0] sm:$0xff]
    %v133 = vld [vmem:[#allocation5 + $0xd8] sm:$0xf]
    %v134 = vld [vmem:[#allocation5 + $0xdc] sm:$0xff]
    %v135 = vld [vmem:[#allocation5 + $0xe4] sm:$0xff]
    %v136 = vld [vmem:[#allocation5 + $0xec] sm:$0xf]
    %v137 = vld [vmem:[#allocation5 + $0xf0] sm:$0xff]
    %v138 = vld [vmem:[#allocation5 + $0xf8] sm:$0xff]
    %v139 = vld [vmem:[#allocation5 + $0x100] sm:$0xf]
    %v140 = vld [vmem:[#allocation5 + $0x104] sm:$0xff]
    %v141 = vld [vmem:[#allocation5 + $0x10c] sm:$0xff]
    %v142 = vld [vmem:[#allocation5 + $0x114] sm:$0xf]
    %v143 = vld [vmem:[#allocation5 + $0x118] sm:$0xff]
    %v144 = vld [vmem:[#allocation5 + $0x120] sm:$0xff]
    %v145 = vld [vmem:[#allocation5 + $0x128] sm:$0xf]
    %v146 = vld [vmem:[#allocation5 + $0x12c] sm:$0xff]
    %v147 = vld [vmem:[#allocation5 + $0x134] sm:$0xff]
    %v148 = vld [vmem:[#allocation5 + $0x13c] sm:$0xf]
    %v149 = vld [vmem:[#allocation5 + $0x140] sm:$0xff]
    %v150 = vld [vmem:[#allocation5 + $0x148] sm:$0xff]
    %v151 = vld [vmem:[#allocation5 + $0x150] sm:$0xf]
    %v152 = vld [vmem:[#allocation5 + $0x154] sm:$0xff]
    %v153 = vld [vmem:[#allocation5 + $0x15c] sm:$0xff]
    %v154 = vld [vmem:[#allocation5 + $0x164] sm:$0xf]
    %v155 = vld [vmem:[#allocation5 + $0x168] sm:$0xff]
    %v156 = vld [vmem:[#allocation5 + $0x170] sm:$0xff]
    %v157 = vld [vmem:[#allocation5 + $0x178] sm:$0xf]
    %v158 = vld [vmem:[#allocation5 + $0x17c] sm:$0xff]
    %v159 = vld [vmem:[#allocation5 + $0x184] sm:$0xff]
    %v160 = vld [vmem:[#allocation5 + $0x18c] sm:$0xf]
    %v161 = vld [vmem:[#allocation5 + $0x190] sm:$0xff]
    %v162 = vld [vmem:[#allocation5 + $0x198] sm:$0xff]
    %v163 = vld [vmem:[#allocation5 + $0x1a0] sm:$0xf]
    %v164 = vld [vmem:[#allocation5 + $0x1a4] sm:$0xff]
    %v165 = vld [vmem:[#allocation5 + $0x1ac] sm:$0xff]
    %v166 = vld [vmem:[#allocation5 + $0x1b4] sm:$0xf]
    %v167 = vld [vmem:[#allocation5 + $0x1b8] sm:$0xff]
    %v168 = vld [vmem:[#allocation5 + $0x1c0] sm:$0xff]
    %v169 = vld [vmem:[#allocation5 + $0x1c8] sm:$0xf]
    %v170 = vld [vmem:[#allocation5 + $0x1cc] sm:$0xff]
    %v171 = vld [vmem:[#allocation5 + $0x1d4] sm:$0xff]
    %v172 = vld [vmem:[#allocation5 + $0x1dc] sm:$0xf]
    %v173 = vld [vmem:[#allocation5 + $0x1e0] sm:$0xff]
    %v174 = vld [vmem:[#allocation5 + $0x1e8] sm:$0xff]
    %v175 = vld [vmem:[#allocation5 + $0x1f0] sm:$0xf]
    %v176 = vld [vmem:[#allocation5 + $0x1f4] sm:$0xff]
    %v177 = vld [vmem:[#allocation5 + $0x1fc] sm:$0xff]
    %v178 = vld [vmem:[#allocation5 + $0x204] sm:$0xf]
    %v179 = vld [vmem:[#allocation5 + $0x208] sm:$0xff]
    %v180 = vld [vmem:[#allocation5 + $0x210] sm:$0xff]
    %v181 = vld [vmem:[#allocation5 + $0x218] sm:$0xf]
    %v182 = vld [vmem:[#allocation5 + $0x21c] sm:$0xff]
    %v183 = vld [vmem:[#allocation5 + $0x224] sm:$0xff]
    %v184 = vld [vmem:[#allocation5 + $0x22c] sm:$0xf]
    %v185 = vld [vmem:[#allocation5 + $0x230] sm:$0xff]
    %v186 = vld [vmem:[#allocation5 + $0x238] sm:$0xff]
    %v187 = vld [vmem:[#allocation5 + $0x240] sm:$0xf]
    %v188 = vld [vmem:[#allocation5 + $0x244] sm:$0xff]
    %v189 = vld [vmem:[#allocation5 + $0x24c] sm:$0xff]
    %v190 = vld [vmem:[#allocation5 + $0x254] sm:$0xf]
    %v191 = vld [vmem:[#allocation5 + $0x258] sm:$0xff]
    %v192 = vld [vmem:[#allocation5 + $0x260] sm:$0xff]
    %v193 = vld [vmem:[#allocation5 + $0x268] sm:$0xf]
    %v194 = vld [vmem:[#allocation5 + $0x26c] sm:$0xff]
    %v195 = vld [vmem:[#allocation5 + $0x274] sm:$0xff]
    %v196 = vld [vmem:[#allocation5 + $0x27c] sm:$0xf]
    %v197 = vld [vmem:[#allocation5 + $0x280] sm:$0xff]
    %v198 = vld [vmem:[#allocation5 + $0x288] sm:$0xff]
    %v199 = vld [vmem:[#allocation5 + $0x290] sm:$0xf]
    %v200 = vld [vmem:[#allocation5 + $0x294] sm:$0xff]
    %v201 = vld [vmem:[#allocation5 + $0x29c] sm:$0xff]
    %v202 = vld [vmem:[#allocation5 + $0x2a4] sm:$0xf]
    %v203 = vld [vmem:[#allocation5 + $0x2a8] sm:$0xff]
    %v204 = vld [vmem:[#allocation5 + $0x2b0] sm:$0xff]
    %v205 = vld [vmem:[#allocation5 + $0x2b8] sm:$0xf]
    %v206 = vld [vmem:[#allocation5 + $0x2bc] sm:$0xff]
    %v207 = vld [vmem:[#allocation5 + $0x2c4] sm:$0xff]
    %v208 = vld [vmem:[#allocation5 + $0x2cc] sm:$0xf]
    %v209 = vld [vmem:[#allocation5 + $0x2d0] sm:$0xff]
    %v210 = vld [vmem:[#allocation5 + $0x2d8] sm:$0xff]
    %v211 = vld [vmem:[#allocation5 + $0x2e0] sm:$0xf]
    %v212 = vld [vmem:[#allocation5 + $0x2e4] sm:$0xff]
    %v213 = vld [vmem:[#allocation5 + $0x2ec] sm:$0xff]
    %v214 = vld [vmem:[#allocation5 + $0x2f4] sm:$0xf]
    %v215 = vld [vmem:[#allocation5 + $0x2f8] sm:$0xff]
    %v216 = vld [vmem:[#allocation5 + $0x300] sm:$0xff]
    %v217 = vld [vmem:[#allocation5 + $0x308] sm:$0xf]
    %v218 = vld [vmem:[#allocation5 + $0x30c] sm:$0xff]
    %v219 = vld [vmem:[#allocation5 + $0x314] sm:$0xff]
    %v220 = vld [vmem:[#allocation5 + $0x31c] sm:$0xf]
    %v221 = vld [vmem:[#allocation5 + $0x320] sm:$0xff]
    %v222 = vld [vmem:[#allocation5 + $0x328] sm:$0xff]
    %v223 = vld [vmem:[#allocation5 + $0x330] sm:$0xf]
    %v224 = vld [vmem:[#allocation5 + $0x334] sm:$0xff]
    %v225 = vld [vmem:[#allocation5 + $0x33c] sm:$0xff]
    %v226 = vld [vmem:[#allocation5 + $0x344] sm:$0xf]
    %v227 = vld [vmem:[#allocation5 + $0x348] sm:$0xff]
    %v228 = vld [vmem:[#allocation5 + $0x350] sm:$0xff]
    %v229 = vld [vmem:[#allocation5 + $0x358] sm:$0xf]
    %v230 = vld [vmem:[#allocation5 + $0x35c] sm:$0xff]
    %v231 = vld [vmem:[#allocation5 + $0x364] sm:$0xff]
    %v232 = vld [vmem:[#allocation5 + $0x36c] sm:$0xf]
    %v233 = vld [vmem:[#allocation5 + $0x370] sm:$0xff]
    %v234 = vld [vmem:[#allocation5 + $0x378] sm:$0xff]
    %v235 = vld [vmem:[#allocation5 + $0x380] sm:$0xf]
    %v236 = vld [vmem:[#allocation5 + $0x384] sm:$0xff]
    %v237 = vld [vmem:[#allocation5 + $0x38c] sm:$0xff]
    %v238 = vld [vmem:[#allocation5 + $0x394] sm:$0xf]
    %v239 = vld [vmem:[#allocation5 + $0x398] sm:$0xff]
    %v240 = vld [vmem:[#allocation5 + $0x3a0] sm:$0xff]
    %v241 = vld [vmem:[#allocation5 + $0x3a8] sm:$0xf]
    %v242 = vld [vmem:[#allocation5 + $0x3ac] sm:$0xff]
    %v243 = vld [vmem:[#allocation5 + $0x3b4] sm:$0xff]
    %v244 = vld [vmem:[#allocation5 + $0x3bc] sm:$0xf]
    %v245 = vld [vmem:[#allocation5 + $0x3c0] sm:$0xff]
    %v246 = vld [vmem:[#allocation5 + $0x3c8] sm:$0xff]
    %v247 = vld [vmem:[#allocation5 + $0x3d0] sm:$0xf]
    %v248 = vld [vmem:[#allocation5 + $0x3d4] sm:$0xff]
    %v249 = vld [vmem:[#allocation5 + $0x3dc] sm:$0xff]
    %v250 = vld [vmem:[#allocation5 + $0x3e4] sm:$0xf]
    %v251 = vld [vmem:[#allocation5 + $0x3e8] sm:$0xff]
    %v252 = vld [vmem:[#allocation5 + $0x3f0] sm:$0xff]
    %v253 = vld [vmem:[#allocation5 + $0x3f8] sm:$0xf]
    %v254 = vld [vmem:[#allocation5 + $0x3fc] sm:$0xff]
    %v255 = vld [vmem:[#allocation5 + $0x404] sm:$0xff]
    %v256 = vld [vmem:[#allocation5 + $0x40c] sm:$0xf]
    %v257 = vld [vmem:[#allocation5 + $0x410] sm:$0xff]
    %v258 = vld [vmem:[#allocation5 + $0x418] sm:$0xff]
    %v259 = vld [vmem:[#allocation5 + $0x420] sm:$0xf]
    %v260 = vld [vmem:[#allocation5 + $0x424] sm:$0xff]
    %v261 = vld [vmem:[#allocation5 + $0x42c] sm:$0xff]
    %v262 = vld [vmem:[#allocation5 + $0x434] sm:$0xf]
    %v263 = vld [vmem:[#allocation5 + $0x438] sm:$0xff]
    %v264 = vld [vmem:[#allocation5 + $0x440] sm:$0xff]
    %v265 = vld [vmem:[#allocation5 + $0x448] sm:$0xf]
    %v266 = vld [vmem:[#allocation5 + $0x44c] sm:$0xff]
    %v267 = vld [vmem:[#allocation5 + $0x454] sm:$0xff]
    %v268 = vld [vmem:[#allocation5 + $0x45c] sm:$0xf]
    %v269 = vld [vmem:[#allocation5 + $0x460] sm:$0xff]
    %v270 = vld [vmem:[#allocation5 + $0x468] sm:$0xff]
    %v271 = vld [vmem:[#allocation5 + $0x470] sm:$0xf]
    %v272 = vld [vmem:[#allocation5 + $0x474] sm:$0xff]
    %v273 = vld [vmem:[#allocation5 + $0x47c] sm:$0xff]
    %v274 = vld [vmem:[#allocation5 + $0x484] sm:$0xf]
    %v275 = vld [vmem:[#allocation5 + $0x488] sm:$0xff]
    %v276 = vld [vmem:[#allocation5 + $0x490] sm:$0xff]
    %v277 = vld [vmem:[#allocation5 + $0x498] sm:$0xf]
    %v278 = vld [vmem:[#allocation5 + $0x49c] sm:$0xff]
    %v279 = vld [vmem:[#allocation5 + $0x4a4] sm:$0xff]
    %v280 = vld [vmem:[#allocation5 + $0x4ac] sm:$0xf]
    %v281 = vld [vmem:[#allocation5 + $0x4b0] sm:$0xff]
    %v282 = vld [vmem:[#allocation5 + $0x4b8] sm:$0xff]
    %v283 = vld [vmem:[#allocation5 + $0x4c0] sm:$0xf]
    %v284 = vld [vmem:[#allocation5 + $0x4c4] sm:$0xff]
    %v285 = vld [vmem:[#allocation5 + $0x4cc] sm:$0xff]
    %v286 = vld [vmem:[#allocation5 + $0x4d4] sm:$0xf]
    %v287 = vld [vmem:[#allocation5 + $0x4d8] sm:$0xff]
    %v288 = vld [vmem:[#allocation5 + $0x4e0] sm:$0xff]
    %v289 = vld [vmem:[#allocation5 + $0x4e8] sm:$0xf]
    %v290 = vld [vmem:[#allocation5 + $0x4ec] sm:$0xff]
    %v291 = vld [vmem:[#allocation5 + $0x4f4] sm:$0xff]
    %v292 = vld [vmem:[#allocation5 + $0x4fc] sm:$0xf]
    %v293 = vld [vmem:[#allocation5 + $0x500] sm:$0xff]
    %v294 = vld [vmem:[#allocation5 + $0x508] sm:$0xff]
    %v295 = vld [vmem:[#allocation5 + $0x510] sm:$0xf]
    %v296 = vld [vmem:[#allocation5 + $0x514] sm:$0xff]
    %v297 = vld [vmem:[#allocation5 + $0x51c] sm:$0xff]
    %v298 = vld [vmem:[#allocation5 + $0x524] sm:$0xf]
    %v299 = vld [vmem:[#allocation5 + $0x528] sm:$0xff]
    %v300 = vld [vmem:[#allocation5 + $0x530] sm:$0xff]
    %v301 = vld [vmem:[#allocation5 + $0x538] sm:$0xf]
    %v302 = vld [vmem:[#allocation5 + $0x53c] sm:$0xff]
    %v303 = vld [vmem:[#allocation5 + $0x544] sm:$0xff]
    %v304 = vld [vmem:[#allocation5 + $0x54c] sm:$0xf]
    %v305 = vld [vmem:[#allocation5 + $0x550] sm:$0xff]
    %v306 = vld [vmem:[#allocation5 + $0x558] sm:$0xff]
    %v307 = vld [vmem:[#allocation5 + $0x560] sm:$0xf]
    %v308 = vld [vmem:[#allocation5 + $0x564] sm:$0xff]
    %v309 = vld [vmem:[#allocation5 + $0x56c] sm:$0xff]
    %v310 = vld [vmem:[#allocation5 + $0x574] sm:$0xf]
    %v311 = vld [vmem:[#allocation5 + $0x578] sm:$0xff]
    %v312 = vld [vmem:[#allocation5 + $0x580] sm:$0xff]
    %v313 = vld [vmem:[#allocation5 + $0x588] sm:$0xf]
    %v314 = vld [vmem:[#allocation5 + $0x58c] sm:$0xff]
    %v315 = vld [vmem:[#allocation5 + $0x594] sm:$0xff]
    %v316 = vld [vmem:[#allocation5 + $0x59c] sm:$0xf]
    %v317 = vld [vmem:[#allocation5 + $0x5a0] sm:$0xff]
    %v318 = vld [vmem:[#allocation5 + $0x5a8] sm:$0xff]
    %v319 = vld [vmem:[#allocation5 + $0x5b0] sm:$0xf]
    %v320 = vld [vmem:[#allocation5 + $0x5b4] sm:$0xff]
    %v321 = vld [vmem:[#allocation5 + $0x5bc] sm:$0xff]
    %v322 = vld [vmem:[#allocation5 + $0x5c4] sm:$0xf]
    %v323 = vld [vmem:[#allocation5 + $0x5c8] sm:$0xff]
    %v324 = vld [vmem:[#allocation5 + $0x5d0] sm:$0xff]
    %v325 = vld [vmem:[#allocation5 + $0x5d8] sm:$0xf]
    %v326 = vld [vmem:[#allocation5 + $0x5dc] sm:$0xff]
    %v327 = vld [vmem:[#allocation5 + $0x5e4] sm:$0xff]
    %v328 = vld [vmem:[#allocation5 + $0x5ec] sm:$0xf]
    %v329 = vld [vmem:[#allocation5 + $0x5f0] sm:$0xff]
    %v330 = vld [vmem:[#allocation5 + $0x5f8] sm:$0xff]
    %v331 = vld [vmem:[#allocation5 + $0x600] sm:$0xf]
    %v332 = vld [vmem:[#allocation5 + $0x604] sm:$0xff]
    %v333 = vld [vmem:[#allocation5 + $0x60c] sm:$0xff]
    %v334 = vld [vmem:[#allocation5 + $0x614] sm:$0xf]
    %v335 = vld [vmem:[#allocation5 + $0x618] sm:$0xff]
    %v336 = vld [vmem:[#allocation5 + $0x620] sm:$0xff]
    %v337 = vld [vmem:[#allocation5 + $0x628] sm:$0xf]
    %v338 = vld [vmem:[#allocation5 + $0x62c] sm:$0xff]
    %v339 = vld [vmem:[#allocation5 + $0x634] sm:$0xff]
    %v340 = vld [vmem:[#allocation5 + $0x63c] sm:$0xf]
    %v341 = vld [vmem:[#allocation7] sm:$0x1f]
    %v343 = vperm.slane %v341, 0
    %v344 = vperm.slane %v341, 1
    %v345 = vperm.slane %v341, 2
    %v346 = vperm.slane %v341, 3
    %v347 = vperm.slane %v341, 4
    %v359 = vunpack.c.l.b16 %v95
    %v360 = vunpack.c.h.b16 %v95
    %v361 = vunpack.c.l.b16 %v96
    %v362 = vunpack.c.h.b16 %v96
    %v363 = vunpack.c.l.b16 %v97
    %v364 = vunpack.c.l.b16 %v98
    %v365 = vunpack.c.h.b16 %v98
    %v366 = vunpack.c.l.b16 %v99
    %v367 = vunpack.c.h.b16 %v99
    %v368 = vunpack.c.l.b16 %v100
    %v369 = vpack.c.b16 %v364, %v359
    %v370 = vpack.c.b16 %v365, %v360
    %v371 = vpack.c.b16 %v366, %v361
    %v372 = vpack.c.b16 %v367, %v362
    %v373 = vpack.c.b16 %v368, %v363
    %v619 = vunpack.c.l.b16 %v101
    %v620 = vunpack.c.h.b16 %v101
    %v621 = vunpack.c.l.b16 %v102
    %v622 = vunpack.c.h.b16 %v102
    %v623 = vunpack.c.l.b16 %v103
    %v624 = vunpack.c.l.b16 %v104
    %v625 = vunpack.c.h.b16 %v104
    %v626 = vunpack.c.l.b16 %v105
    %v627 = vunpack.c.h.b16 %v105
    %v628 = vunpack.c.l.b16 %v106
    %v629 = vunpack.c.l.b16 %v107
    %v630 = vunpack.c.h.b16 %v107
    %v631 = vunpack.c.l.b16 %v108
    %v632 = vunpack.c.h.b16 %v108
    %v633 = vunpack.c.l.b16 %v109
    %v634 = vunpack.c.l.b16 %v110
    %v635 = vunpack.c.h.b16 %v110
    %v636 = vunpack.c.l.b16 %v111
    %v637 = vunpack.c.h.b16 %v111
    %v638 = vunpack.c.l.b16 %v112
    %v639 = vunpack.c.l.b16 %v113
    %v640 = vunpack.c.h.b16 %v113
    %v641 = vunpack.c.l.b16 %v114
    %v642 = vunpack.c.h.b16 %v114
    %v643 = vunpack.c.l.b16 %v115
    %v644 = vunpack.c.l.b16 %v116
    %v645 = vunpack.c.h.b16 %v116
    %v646 = vunpack.c.l.b16 %v117
    %v647 = vunpack.c.h.b16 %v117
    %v648 = vunpack.c.l.b16 %v118
    %v649 = vunpack.c.l.b16 %v119
    %v650 = vunpack.c.h.b16 %v119
    %v651 = vunpack.c.l.b16 %v120
    %v652 = vunpack.c.h.b16 %v120
    %v653 = vunpack.c.l.b16 %v121
    %v654 = vunpack.c.l.b16 %v122
    %v655 = vunpack.c.h.b16 %v122
    %v656 = vunpack.c.l.b16 %v123
    %v657 = vunpack.c.h.b16 %v123
    %v658 = vunpack.c.l.b16 %v124
    %v659 = vunpack.c.l.b16 %v125
    %v660 = vunpack.c.h.b16 %v125
    %v661 = vunpack.c.l.b16 %v126
    %v662 = vunpack.c.h.b16 %v126
    %v663 = vunpack.c.l.b16 %v127
    %v664 = vunpack.c.l.b16 %v128
    %v665 = vunpack.c.h.b16 %v128
    %v666 = vunpack.c.l.b16 %v129
    %v667 = vunpack.c.h.b16 %v129
    %v668 = vunpack.c.l.b16 %v130
    %v669 = vunpack.c.l.b16 %v131
    %v670 = vunpack.c.h.b16 %v131
    %v671 = vunpack.c.l.b16 %v132
    %v672 = vunpack.c.h.b16 %v132
    %v673 = vunpack.c.l.b16 %v133
    %v674 = vunpack.c.l.b16 %v134
    %v675 = vunpack.c.h.b16 %v134
    %v676 = vunpack.c.l.b16 %v135
    %v677 = vunpack.c.h.b16 %v135
    %v678 = vunpack.c.l.b16 %v136
    %v679 = vunpack.c.l.b16 %v137
    %v680 = vunpack.c.h.b16 %v137
    %v681 = vunpack.c.l.b16 %v138
    %v682 = vunpack.c.h.b16 %v138
    %v683 = vunpack.c.l.b16 %v139
    %v684 = vunpack.c.l.b16 %v140
    %v685 = vunpack.c.h.b16 %v140
    %v686 = vunpack.c.l.b16 %v141
    %v687 = vunpack.c.h.b16 %v141
    %v688 = vunpack.c.l.b16 %v142
    %v689 = vunpack.c.l.b16 %v143
    %v690 = vunpack.c.h.b16 %v143
    %v691 = vunpack.c.l.b16 %v144
    %v692 = vunpack.c.h.b16 %v144
    %v693 = vunpack.c.l.b16 %v145
    %v694 = vunpack.c.l.b16 %v146
    %v695 = vunpack.c.h.b16 %v146
    %v696 = vunpack.c.l.b16 %v147
    %v697 = vunpack.c.h.b16 %v147
    %v698 = vunpack.c.l.b16 %v148
    %v699 = vunpack.c.l.b16 %v149
    %v700 = vunpack.c.h.b16 %v149
    %v701 = vunpack.c.l.b16 %v150
    %v702 = vunpack.c.h.b16 %v150
    %v703 = vunpack.c.l.b16 %v151
    %v704 = vunpack.c.l.b16 %v152
    %v705 = vunpack.c.h.b16 %v152
    %v706 = vunpack.c.l.b16 %v153
    %v707 = vunpack.c.h.b16 %v153
    %v708 = vunpack.c.l.b16 %v154
    %v709 = vunpack.c.l.b16 %v155
    %v710 = vunpack.c.h.b16 %v155
    %v711 = vunpack.c.l.b16 %v156
    %v712 = vunpack.c.h.b16 %v156
    %v713 = vunpack.c.l.b16 %v157
    %v714 = vunpack.c.l.b16 %v158
    %v715 = vunpack.c.h.b16 %v158
    %v716 = vunpack.c.l.b16 %v159
    %v717 = vunpack.c.h.b16 %v159
    %v718 = vunpack.c.l.b16 %v160
    %v719 = vunpack.c.l.b16 %v161
    %v720 = vunpack.c.h.b16 %v161
    %v721 = vunpack.c.l.b16 %v162
    %v722 = vunpack.c.h.b16 %v162
    %v723 = vunpack.c.l.b16 %v163
    %v724 = vunpack.c.l.b16 %v164
    %v725 = vunpack.c.h.b16 %v164
    %v726 = vunpack.c.l.b16 %v165
    %v727 = vunpack.c.h.b16 %v165
    %v728 = vunpack.c.l.b16 %v166
    %v729 = vunpack.c.l.b16 %v167
    %v730 = vunpack.c.h.b16 %v167
    %v731 = vunpack.c.l.b16 %v168
    %v732 = vunpack.c.h.b16 %v168
    %v733 = vunpack.c.l.b16 %v169
    %v734 = vunpack.c.l.b16 %v170
    %v735 = vunpack.c.h.b16 %v170
    %v736 = vunpack.c.l.b16 %v171
    %v737 = vunpack.c.h.b16 %v171
    %v738 = vunpack.c.l.b16 %v172
    %v739 = vunpack.c.l.b16 %v173
    %v740 = vunpack.c.h.b16 %v173
    %v741 = vunpack.c.l.b16 %v174
    %v742 = vunpack.c.h.b16 %v174
    %v743 = vunpack.c.l.b16 %v175
    %v744 = vunpack.c.l.b16 %v176
    %v745 = vunpack.c.h.b16 %v176
    %v746 = vunpack.c.l.b16 %v177
    %v747 = vunpack.c.h.b16 %v177
    %v748 = vunpack.c.l.b16 %v178
    %v749 = vunpack.c.l.b16 %v179
    %v750 = vunpack.c.h.b16 %v179
    %v751 = vunpack.c.l.b16 %v180
    %v752 = vunpack.c.h.b16 %v180
    %v753 = vunpack.c.l.b16 %v181
    %v754 = vunpack.c.l.b16 %v182
    %v755 = vunpack.c.h.b16 %v182
    %v756 = vunpack.c.l.b16 %v183
    %v757 = vunpack.c.h.b16 %v183
    %v758 = vunpack.c.l.b16 %v184
    %v759 = vunpack.c.l.b16 %v185
    %v760 = vunpack.c.h.b16 %v185
    %v761 = vunpack.c.l.b16 %v186
    %v762 = vunpack.c.h.b16 %v186
    %v763 = vunpack.c.l.b16 %v187
    %v764 = vunpack.c.l.b16 %v188
    %v765 = vunpack.c.h.b16 %v188
    %v766 = vunpack.c.l.b16 %v189
    %v767 = vunpack.c.h.b16 %v189
    %v768 = vunpack.c.l.b16 %v190
    %v769 = vunpack.c.l.b16 %v191
    %v770 = vunpack.c.h.b16 %v191
    %v771 = vunpack.c.l.b16 %v192
    %v772 = vunpack.c.h.b16 %v192
    %v773 = vunpack.c.l.b16 %v193
    %v774 = vunpack.c.l.b16 %v194
    %v775 = vunpack.c.h.b16 %v194
    %v776 = vunpack.c.l.b16 %v195
    %v777 = vunpack.c.h.b16 %v195
    %v778 = vunpack.c.l.b16 %v196
    %v779 = vunpack.c.l.b16 %v197
    %v780 = vunpack.c.h.b16 %v197
    %v781 = vunpack.c.l.b16 %v198
    %v782 = vunpack.c.h.b16 %v198
    %v783 = vunpack.c.l.b16 %v199
    %v784 = vunpack.c.l.b16 %v200
    %v785 = vunpack.c.h.b16 %v200
    %v786 = vunpack.c.l.b16 %v201
    %v787 = vunpack.c.h.b16 %v201
    %v788 = vunpack.c.l.b16 %v202
    %v789 = vunpack.c.l.b16 %v203
    %v790 = vunpack.c.h.b16 %v203
    %v791 = vunpack.c.l.b16 %v204
    %v792 = vunpack.c.h.b16 %v204
    %v793 = vunpack.c.l.b16 %v205
    %v794 = vunpack.c.l.b16 %v206
    %v795 = vunpack.c.h.b16 %v206
    %v796 = vunpack.c.l.b16 %v207
    %v797 = vunpack.c.h.b16 %v207
    %v798 = vunpack.c.l.b16 %v208
    %v799 = vunpack.c.l.b16 %v209
    %v800 = vunpack.c.h.b16 %v209
    %v801 = vunpack.c.l.b16 %v210
    %v802 = vunpack.c.h.b16 %v210
    %v803 = vunpack.c.l.b16 %v211
    %v804 = vunpack.c.l.b16 %v212
    %v805 = vunpack.c.h.b16 %v212
    %v806 = vunpack.c.l.b16 %v213
    %v807 = vunpack.c.h.b16 %v213
    %v808 = vunpack.c.l.b16 %v214
    %v809 = vunpack.c.l.b16 %v215
    %v810 = vunpack.c.h.b16 %v215
    %v811 = vunpack.c.l.b16 %v216
    %v812 = vunpack.c.h.b16 %v216
    %v813 = vunpack.c.l.b16 %v217
    %v814 = vunpack.c.l.b16 %v218
    %v815 = vunpack.c.h.b16 %v218
    %v816 = vunpack.c.l.b16 %v219
    %v817 = vunpack.c.h.b16 %v219
    %v818 = vunpack.c.l.b16 %v220
    %v819 = vunpack.c.l.b16 %v221
    %v820 = vunpack.c.h.b16 %v221
    %v821 = vunpack.c.l.b16 %v222
    %v822 = vunpack.c.h.b16 %v222
    %v823 = vunpack.c.l.b16 %v223
    %v824 = vunpack.c.l.b16 %v224
    %v825 = vunpack.c.h.b16 %v224
    %v826 = vunpack.c.l.b16 %v225
    %v827 = vunpack.c.h.b16 %v225
    %v828 = vunpack.c.l.b16 %v226
    %v829 = vunpack.c.l.b16 %v227
    %v830 = vunpack.c.h.b16 %v227
    %v831 = vunpack.c.l.b16 %v228
    %v832 = vunpack.c.h.b16 %v228
    %v833 = vunpack.c.l.b16 %v229
    %v834 = vunpack.c.l.b16 %v230
    %v835 = vunpack.c.h.b16 %v230
    %v836 = vunpack.c.l.b16 %v231
    %v837 = vunpack.c.h.b16 %v231
    %v838 = vunpack.c.l.b16 %v232
    %v839 = vunpack.c.l.b16 %v233
    %v840 = vunpack.c.h.b16 %v233
    %v841 = vunpack.c.l.b16 %v234
    %v842 = vunpack.c.h.b16 %v234
    %v843 = vunpack.c.l.b16 %v235
    %v844 = vunpack.c.l.b16 %v236
    %v845 = vunpack.c.h.b16 %v236
    %v846 = vunpack.c.l.b16 %v237
    %v847 = vunpack.c.h.b16 %v237
    %v848 = vunpack.c.l.b16 %v238
    %v849 = vunpack.c.l.b16 %v239
    %v850 = vunpack.c.h.b16 %v239
    %v851 = vunpack.c.l.b16 %v240
    %v852 = vunpack.c.h.b16 %v240
    %v853 = vunpack.c.l.b16 %v241
    %v854 = vunpack.c.l.b16 %v242
    %v855 = vunpack.c.h.b16 %v242
    %v856 = vunpack.c.l.b16 %v243
    %v857 = vunpack.c.h.b16 %v243
    %v858 = vunpack.c.l.b16 %v244
    %v859 = vunpack.c.l.b16 %v245
    %v860 = vunpack.c.h.b16 %v245
    %v861 = vunpack.c.l.b16 %v246
    %v862 = vunpack.c.h.b16 %v246
    %v863 = vunpack.c.l.b16 %v247
    %v864 = vunpack.c.l.b16 %v248
    %v865 = vunpack.c.h.b16 %v248
    %v866 = vunpack.c.l.b16 %v249
    %v867 = vunpack.c.h.b16 %v249
    %v868 = vunpack.c.l.b16 %v250
    %v869 = vunpack.c.l.b16 %v251
    %v870 = vunpack.c.h.b16 %v251
    %v871 = vunpack.c.l.b16 %v252
    %v872 = vunpack.c.h.b16 %v252
    %v873 = vunpack.c.l.b16 %v253
    %v874 = vunpack.c.l.b16 %v254
    %v875 = vunpack.c.h.b16 %v254
    %v876 = vunpack.c.l.b16 %v255
    %v877 = vunpack.c.h.b16 %v255
    %v878 = vunpack.c.l.b16 %v256
    %v879 = vunpack.c.l.b16 %v257
    %v880 = vunpack.c.h.b16 %v257
    %v881 = vunpack.c.l.b16 %v258
    %v882 = vunpack.c.h.b16 %v258
    %v883 = vunpack.c.l.b16 %v259
    %v884 = vunpack.c.l.b16 %v260
    %v885 = vunpack.c.h.b16 %v260
    %v886 = vunpack.c.l.b16 %v261
    %v887 = vunpack.c.h.b16 %v261
    %v888 = vunpack.c.l.b16 %v262
    %v889 = vunpack.c.l.b16 %v263
    %v890 = vunpack.c.h.b16 %v263
    %v891 = vunpack.c.l.b16 %v264
    %v892 = vunpack.c.h.b16 %v264
    %v893 = vunpack.c.l.b16 %v265
    %v894 = vunpack.c.l.b16 %v266
    %v895 = vunpack.c.h.b16 %v266
    %v896 = vunpack.c.l.b16 %v267
    %v897 = vunpack.c.h.b16 %v267
    %v898 = vunpack.c.l.b16 %v268
    %v899 = vunpack.c.l.b16 %v269
    %v900 = vunpack.c.h.b16 %v269
    %v901 = vunpack.c.l.b16 %v270
    %v902 = vunpack.c.h.b16 %v270
    %v903 = vunpack.c.l.b16 %v271
    %v904 = vunpack.c.l.b16 %v272
    %v905 = vunpack.c.h.b16 %v272
    %v906 = vunpack.c.l.b16 %v273
    %v907 = vunpack.c.h.b16 %v273
    %v908 = vunpack.c.l.b16 %v274
    %v909 = vunpack.c.l.b16 %v275
    %v910 = vunpack.c.h.b16 %v275
    %v911 = vunpack.c.l.b16 %v276
    %v912 = vunpack.c.h.b16 %v276
    %v913 = vunpack.c.l.b16 %v277
    %v914 = vunpack.c.l.b16 %v278
    %v915 = vunpack.c.h.b16 %v278
    %v916 = vunpack.c.l.b16 %v279
    %v917 = vunpack.c.h.b16 %v279
    %v918 = vunpack.c.l.b16 %v280
    %v919 = vunpack.c.l.b16 %v281
    %v920 = vunpack.c.h.b16 %v281
    %v921 = vunpack.c.l.b16 %v282
    %v922 = vunpack.c.h.b16 %v282
    %v923 = vunpack.c.l.b16 %v283
    %v924 = vunpack.c.l.b16 %v284
    %v925 = vunpack.c.h.b16 %v284
    %v926 = vunpack.c.l.b16 %v285
    %v927 = vunpack.c.h.b16 %v285
    %v928 = vunpack.c.l.b16 %v286
    %v929 = vunpack.c.l.b16 %v287
    %v930 = vunpack.c.h.b16 %v287
    %v931 = vunpack.c.l.b16 %v288
    %v932 = vunpack.c.h.b16 %v288
    %v933 = vunpack.c.l.b16 %v289
    %v934 = vunpack.c.l.b16 %v290
    %v935 = vunpack.c.h.b16 %v290
    %v936 = vunpack.c.l.b16 %v291
    %v937 = vunpack.c.h.b16 %v291
    %v938 = vunpack.c.l.b16 %v292
    %v939 = vunpack.c.l.b16 %v293
    %v940 = vunpack.c.h.b16 %v293
    %v941 = vunpack.c.l.b16 %v294
    %v942 = vunpack.c.h.b16 %v294
    %v943 = vunpack.c.l.b16 %v295
    %v944 = vunpack.c.l.b16 %v296
    %v945 = vunpack.c.h.b16 %v296
    %v946 = vunpack.c.l.b16 %v297
    %v947 = vunpack.c.h.b16 %v297
    %v948 = vunpack.c.l.b16 %v298
    %v949 = vunpack.c.l.b16 %v299
    %v950 = vunpack.c.h.b16 %v299
    %v951 = vunpack.c.l.b16 %v300
    %v952 = vunpack.c.h.b16 %v300
    %v953 = vunpack.c.l.b16 %v301
    %v954 = vunpack.c.l.b16 %v302
    %v955 = vunpack.c.h.b16 %v302
    %v956 = vunpack.c.l.b16 %v303
    %v957 = vunpack.c.h.b16 %v303
    %v958 = vunpack.c.l.b16 %v304
    %v959 = vunpack.c.l.b16 %v305
    %v960 = vunpack.c.h.b16 %v305
    %v961 = vunpack.c.l.b16 %v306
    %v962 = vunpack.c.h.b16 %v306
    %v963 = vunpack.c.l.b16 %v307
    %v964 = vunpack.c.l.b16 %v308
    %v965 = vunpack.c.h.b16 %v308
    %v966 = vunpack.c.l.b16 %v309
    %v967 = vunpack.c.h.b16 %v309
    %v968 = vunpack.c.l.b16 %v310
    %v969 = vunpack.c.l.b16 %v311
    %v970 = vunpack.c.h.b16 %v311
    %v971 = vunpack.c.l.b16 %v312
    %v972 = vunpack.c.h.b16 %v312
    %v973 = vunpack.c.l.b16 %v313
    %v974 = vunpack.c.l.b16 %v314
    %v975 = vunpack.c.h.b16 %v314
    %v976 = vunpack.c.l.b16 %v315
    %v977 = vunpack.c.h.b16 %v315
    %v978 = vunpack.c.l.b16 %v316
    %v979 = vunpack.c.l.b16 %v317
    %v980 = vunpack.c.h.b16 %v317
    %v981 = vunpack.c.l.b16 %v318
    %v982 = vunpack.c.h.b16 %v318
    %v983 = vunpack.c.l.b16 %v319
    %v984 = vunpack.c.l.b16 %v320
    %v985 = vunpack.c.h.b16 %v320
    %v986 = vunpack.c.l.b16 %v321
    %v987 = vunpack.c.h.b16 %v321
    %v988 = vunpack.c.l.b16 %v322
    %v989 = vunpack.c.l.b16 %v323
    %v990 = vunpack.c.h.b16 %v323
    %v991 = vunpack.c.l.b16 %v324
    %v992 = vunpack.c.h.b16 %v324
    %v993 = vunpack.c.l.b16 %v325
    %v994 = vunpack.c.l.b16 %v326
    %v995 = vunpack.c.h.b16 %v326
    %v996 = vunpack.c.l.b16 %v327
    %v997 = vunpack.c.h.b16 %v327
    %v998 = vunpack.c.l.b16 %v328
    %v999 = vunpack.c.l.b16 %v329
    %v1000 = vunpack.c.h.b16 %v329
    %v1001 = vunpack.c.l.b16 %v330
    %v1002 = vunpack.c.h.b16 %v330
    %v1003 = vunpack.c.l.b16 %v331
    %v1004 = vunpack.c.l.b16 %v332
    %v1005 = vunpack.c.h.b16 %v332
    %v1006 = vunpack.c.l.b16 %v333
    %v1007 = vunpack.c.h.b16 %v333
    %v1008 = vunpack.c.l.b16 %v334
    %v1009 = vunpack.c.l.b16 %v335
    %v1010 = vunpack.c.h.b16 %v335
    %v1011 = vunpack.c.l.b16 %v336
    %v1012 = vunpack.c.h.b16 %v336
    %v1013 = vunpack.c.l.b16 %v337
    %v1014 = vunpack.c.l.b16 %v338
    %v1015 = vunpack.c.h.b16 %v338
    %v1016 = vunpack.c.l.b16 %v339
    %v1017 = vunpack.c.h.b16 %v339
    %v1018 = vunpack.c.l.b16 %v340
    %v1019 = vpack.c.b16 %v624, %v619
    %v1020 = vpack.c.b16 %v625, %v620
    %v1021 = vpack.c.b16 %v626, %v621
    %v1022 = vpack.c.b16 %v627, %v622
    %v1023 = vpack.c.b16 %v628, %v623
    %v1024 = vpack.c.b16 %v634, %v629
    %v1025 = vpack.c.b16 %v635, %v630
    %v1026 = vpack.c.b16 %v636, %v631
    %v1027 = vpack.c.b16 %v637, %v632
    %v1028 = vpack.c.b16 %v638, %v633
    %v1029 = vpack.c.b16 %v644, %v639
    %v1030 = vpack.c.b16 %v645, %v640
    %v1031 = vpack.c.b16 %v646, %v641
    %v1032 = vpack.c.b16 %v647, %v642
    %v1033 = vpack.c.b16 %v648, %v643
    %v1034 = vpack.c.b16 %v654, %v649
    %v1035 = vpack.c.b16 %v655, %v650
    %v1036 = vpack.c.b16 %v656, %v651
    %v1037 = vpack.c.b16 %v657, %v652
    %v1038 = vpack.c.b16 %v658, %v653
    %v1039 = vpack.c.b16 %v664, %v659
    %v1040 = vpack.c.b16 %v665, %v660
    %v1041 = vpack.c.b16 %v666, %v661
    %v1042 = vpack.c.b16 %v667, %v662
    %v1043 = vpack.c.b16 %v668, %v663
    %v1044 = vpack.c.b16 %v674, %v669
    %v1045 = vpack.c.b16 %v675, %v670
    %v1046 = vpack.c.b16 %v676, %v671
    %v1047 = vpack.c.b16 %v677, %v672
    %v1048 = vpack.c.b16 %v678, %v673
    %v1049 = vpack.c.b16 %v684, %v679
    %v1050 = vpack.c.b16 %v685, %v680
    %v1051 = vpack.c.b16 %v686, %v681
    %v1052 = vpack.c.b16 %v687, %v682
    %v1053 = vpack.c.b16 %v688, %v683
    %v1054 = vpack.c.b16 %v694, %v689
    %v1055 = vpack.c.b16 %v695, %v690
    %v1056 = vpack.c.b16 %v696, %v691
    %v1057 = vpack.c.b16 %v697, %v692
    %v1058 = vpack.c.b16 %v698, %v693
    %v1059 = vpack.c.b16 %v704, %v699
    %v1060 = vpack.c.b16 %v705, %v700
    %v1061 = vpack.c.b16 %v706, %v701
    %v1062 = vpack.c.b16 %v707, %v702
    %v1063 = vpack.c.b16 %v708, %v703
    %v1064 = vpack.c.b16 %v714, %v709
    %v1065 = vpack.c.b16 %v715, %v710
    %v1066 = vpack.c.b16 %v716, %v711
    %v1067 = vpack.c.b16 %v717, %v712
    %v1068 = vpack.c.b16 %v718, %v713
    %v1069 = vpack.c.b16 %v724, %v719
    %v1070 = vpack.c.b16 %v725, %v720
    %v1071 = vpack.c.b16 %v726, %v721
    %v1072 = vpack.c.b16 %v727, %v722
    %v1073 = vpack.c.b16 %v728, %v723
    %v1074 = vpack.c.b16 %v734, %v729
    %v1075 = vpack.c.b16 %v735, %v730
    %v1076 = vpack.c.b16 %v736, %v731
    %v1077 = vpack.c.b16 %v737, %v732
    %v1078 = vpack.c.b16 %v738, %v733
    %v1079 = vpack.c.b16 %v744, %v739
    %v1080 = vpack.c.b16 %v745, %v740
    %v1081 = vpack.c.b16 %v746, %v741
    %v1082 = vpack.c.b16 %v747, %v742
    %v1083 = vpack.c.b16 %v748, %v743
    %v1084 = vpack.c.b16 %v754, %v749
    %v1085 = vpack.c.b16 %v755, %v750
    %v1086 = vpack.c.b16 %v756, %v751
    %v1087 = vpack.c.b16 %v757, %v752
    %v1088 = vpack.c.b16 %v758, %v753
    %v1089 = vpack.c.b16 %v764, %v759
    %v1090 = vpack.c.b16 %v765, %v760
    %v1091 = vpack.c.b16 %v766, %v761
    %v1092 = vpack.c.b16 %v767, %v762
    %v1093 = vpack.c.b16 %v768, %v763
    %v1094 = vpack.c.b16 %v774, %v769
    %v1095 = vpack.c.b16 %v775, %v770
    %v1096 = vpack.c.b16 %v776, %v771
    %v1097 = vpack.c.b16 %v777, %v772
    %v1098 = vpack.c.b16 %v778, %v773
    %v1099 = vpack.c.b16 %v784, %v779
    %v1100 = vpack.c.b16 %v785, %v780
    %v1101 = vpack.c.b16 %v786, %v781
    %v1102 = vpack.c.b16 %v787, %v782
    %v1103 = vpack.c.b16 %v788, %v783
    %v1104 = vpack.c.b16 %v794, %v789
    %v1105 = vpack.c.b16 %v795, %v790
    %v1106 = vpack.c.b16 %v796, %v791
    %v1107 = vpack.c.b16 %v797, %v792
    %v1108 = vpack.c.b16 %v798, %v793
    %v1109 = vpack.c.b16 %v804, %v799
    %v1110 = vpack.c.b16 %v805, %v800
    %v1111 = vpack.c.b16 %v806, %v801
    %v1112 = vpack.c.b16 %v807, %v802
    %v1113 = vpack.c.b16 %v808, %v803
    %v1114 = vpack.c.b16 %v814, %v809
    %v1115 = vpack.c.b16 %v815, %v810
    %v1116 = vpack.c.b16 %v816, %v811
    %v1117 = vpack.c.b16 %v817, %v812
    %v1118 = vpack.c.b16 %v818, %v813
    %v1119 = vpack.c.b16 %v824, %v819
    %v1120 = vpack.c.b16 %v825, %v820
    %v1121 = vpack.c.b16 %v826, %v821
    %v1122 = vpack.c.b16 %v827, %v822
    %v1123 = vpack.c.b16 %v828, %v823
    %v1124 = vpack.c.b16 %v834, %v829
    %v1125 = vpack.c.b16 %v835, %v830
    %v1126 = vpack.c.b16 %v836, %v831
    %v1127 = vpack.c.b16 %v837, %v832
    %v1128 = vpack.c.b16 %v838, %v833
    %v1129 = vpack.c.b16 %v844, %v839
    %v1130 = vpack.c.b16 %v845, %v840
    %v1131 = vpack.c.b16 %v846, %v841
    %v1132 = vpack.c.b16 %v847, %v842
    %v1133 = vpack.c.b16 %v848, %v843
    %v1134 = vpack.c.b16 %v854, %v849
    %v1135 = vpack.c.b16 %v855, %v850
    %v1136 = vpack.c.b16 %v856, %v851
    %v1137 = vpack.c.b16 %v857, %v852
    %v1138 = vpack.c.b16 %v858, %v853
    %v1139 = vpack.c.b16 %v864, %v859
    %v1140 = vpack.c.b16 %v865, %v860
    %v1141 = vpack.c.b16 %v866, %v861
    %v1142 = vpack.c.b16 %v867, %v862
    %v1143 = vpack.c.b16 %v868, %v863
    %v1144 = vpack.c.b16 %v874, %v869
    %v1145 = vpack.c.b16 %v875, %v870
    %v1146 = vpack.c.b16 %v876, %v871
    %v1147 = vpack.c.b16 %v877, %v872
    %v1148 = vpack.c.b16 %v878, %v873
    %v1149 = vpack.c.b16 %v884, %v879
    %v1150 = vpack.c.b16 %v885, %v880
    %v1151 = vpack.c.b16 %v886, %v881
    %v1152 = vpack.c.b16 %v887, %v882
    %v1153 = vpack.c.b16 %v888, %v883
    %v1154 = vpack.c.b16 %v894, %v889
    %v1155 = vpack.c.b16 %v895, %v890
    %v1156 = vpack.c.b16 %v896, %v891
    %v1157 = vpack.c.b16 %v897, %v892
    %v1158 = vpack.c.b16 %v898, %v893
    %v1159 = vpack.c.b16 %v904, %v899
    %v1160 = vpack.c.b16 %v905, %v900
    %v1161 = vpack.c.b16 %v906, %v901
    %v1162 = vpack.c.b16 %v907, %v902
    %v1163 = vpack.c.b16 %v908, %v903
    %v1164 = vpack.c.b16 %v914, %v909
    %v1165 = vpack.c.b16 %v915, %v910
    %v1166 = vpack.c.b16 %v916, %v911
    %v1167 = vpack.c.b16 %v917, %v912
    %v1168 = vpack.c.b16 %v918, %v913
    %v1169 = vpack.c.b16 %v924, %v919
    %v1170 = vpack.c.b16 %v925, %v920
    %v1171 = vpack.c.b16 %v926, %v921
    %v1172 = vpack.c.b16 %v927, %v922
    %v1173 = vpack.c.b16 %v928, %v923
    %v1174 = vpack.c.b16 %v934, %v929
    %v1175 = vpack.c.b16 %v935, %v930
    %v1176 = vpack.c.b16 %v936, %v931
    %v1177 = vpack.c.b16 %v937, %v932
    %v1178 = vpack.c.b16 %v938, %v933
    %v1179 = vpack.c.b16 %v944, %v939
    %v1180 = vpack.c.b16 %v945, %v940
    %v1181 = vpack.c.b16 %v946, %v941
    %v1182 = vpack.c.b16 %v947, %v942
    %v1183 = vpack.c.b16 %v948, %v943
    %v1184 = vpack.c.b16 %v954, %v949
    %v1185 = vpack.c.b16 %v955, %v950
    %v1186 = vpack.c.b16 %v956, %v951
    %v1187 = vpack.c.b16 %v957, %v952
    %v1188 = vpack.c.b16 %v958, %v953
    %v1189 = vpack.c.b16 %v964, %v959
    %v1190 = vpack.c.b16 %v965, %v960
    %v1191 = vpack.c.b16 %v966, %v961
    %v1192 = vpack.c.b16 %v967, %v962
    %v1193 = vpack.c.b16 %v968, %v963
    %v1194 = vpack.c.b16 %v974, %v969
    %v1195 = vpack.c.b16 %v975, %v970
    %v1196 = vpack.c.b16 %v976, %v971
    %v1197 = vpack.c.b16 %v977, %v972
    %v1198 = vpack.c.b16 %v978, %v973
    %v1199 = vpack.c.b16 %v984, %v979
    %v1200 = vpack.c.b16 %v985, %v980
    %v1201 = vpack.c.b16 %v986, %v981
    %v1202 = vpack.c.b16 %v987, %v982
    %v1203 = vpack.c.b16 %v988, %v983
    %v1204 = vpack.c.b16 %v994, %v989
    %v1205 = vpack.c.b16 %v995, %v990
    %v1206 = vpack.c.b16 %v996, %v991
    %v1207 = vpack.c.b16 %v997, %v992
    %v1208 = vpack.c.b16 %v998, %v993
    %v1209 = vpack.c.b16 %v1004, %v999
    %v1210 = vpack.c.b16 %v1005, %v1000
    %v1211 = vpack.c.b16 %v1006, %v1001
    %v1212 = vpack.c.b16 %v1007, %v1002
    %v1213 = vpack.c.b16 %v1008, %v1003
    %v1214 = vpack.c.b16 %v1014, %v1009
    %v1215 = vpack.c.b16 %v1015, %v1010
    %v1216 = vpack.c.b16 %v1016, %v1011
    %v1217 = vpack.c.b16 %v1017, %v1012
    %v1218 = vpack.c.b16 %v1018, %v1013
    %1419 = vmatpush.bf16.xpose.msra.mxu0 %v1054
    %1420 = vmatpush.bf16.xpose.msra.mxu0 %v1049
    %1421 = vmatpush.bf16.xpose.msra.mxu0 %v1044
    %1422 = vmatpush.bf16.xpose.msra.mxu0 %v1039
    %1423 = vmatpush.bf16.xpose.msra.mxu0 %v1034
    %1424 = vmatpush.bf16.xpose.msra.mxu0 %v1029
    %1425 = vmatpush.bf16.xpose.msra.mxu0 %v1024
    %1426 = vmatpush.bf16.xpose.msra.mxu0 %v1019
    %1427 = vmatmul.bf16.gmra.mxu0 %v369
    %v1428 = vpop.f32.mrf.mxu0
    %v1429 = vadd.f32 %v343, %v1428
    %v1430 = vpop.f32.mrf.mxu0
    %v1431 = vadd.f32 %v343, %v1430
    %1432 = vdwg.mxu0
    %1433 = vmatpush.bf16.xpose.msra.mxu0 %v1055
    %1434 = vmatpush.bf16.xpose.msra.mxu0 %v1050
    %1435 = vmatpush.bf16.xpose.msra.mxu0 %v1045
    %1436 = vmatpush.bf16.xpose.msra.mxu0 %v1040
    %1437 = vmatpush.bf16.xpose.msra.mxu0 %v1035
    %1438 = vmatpush.bf16.xpose.msra.mxu0 %v1030
    %1439 = vmatpush.bf16.xpose.msra.mxu0 %v1025
    %1440 = vmatpush.bf16.xpose.msra.mxu0 %v1020
    %1441 = vmatmul.bf16.gmra.mxu0 %v370
    %v1442 = vpop.f32.mrf.mxu0
    %v1443 = vadd.f32 %v1429, %v1442
    %v1444 = vpop.f32.mrf.mxu0
    %v1445 = vadd.f32 %v1431, %v1444
    %1446 = vdwg.mxu0
    %1447 = vmatpush.bf16.xpose.msra.mxu0 %v1056
    %1448 = vmatpush.bf16.xpose.msra.mxu0 %v1051
    %1449 = vmatpush.bf16.xpose.msra.mxu0 %v1046
    %1450 = vmatpush.bf16.xpose.msra.mxu0 %v1041
    %1451 = vmatpush.bf16.xpose.msra.mxu0 %v1036
    %1452 = vmatpush.bf16.xpose.msra.mxu0 %v1031
    %1453 = vmatpush.bf16.xpose.msra.mxu0 %v1026
    %1454 = vmatpush.bf16.xpose.msra.mxu0 %v1021
    %1455 = vmatmul.bf16.gmra.mxu0 %v371
    %v1456 = vpop.f32.mrf.mxu0
    %v1457 = vadd.f32 %v1443, %v1456
    %v1458 = vpop.f32.mrf.mxu0
    %v1459 = vadd.f32 %v1445, %v1458
    %1460 = vdwg.mxu0
    %1461 = vmatpush.bf16.xpose.msra.mxu0 %v1057
    %1462 = vmatpush.bf16.xpose.msra.mxu0 %v1052
    %1463 = vmatpush.bf16.xpose.msra.mxu0 %v1047
    %1464 = vmatpush.bf16.xpose.msra.mxu0 %v1042
    %1465 = vmatpush.bf16.xpose.msra.mxu0 %v1037
    %1466 = vmatpush.bf16.xpose.msra.mxu0 %v1032
    %1467 = vmatpush.bf16.xpose.msra.mxu0 %v1027
    %1468 = vmatpush.bf16.xpose.msra.mxu0 %v1022
    %1469 = vmatmul.bf16.gmra.mxu0 %v372
    %v1470 = vpop.f32.mrf.mxu0
    %v1471 = vadd.f32 %v1457, %v1470
    %v1472 = vpop.f32.mrf.mxu0
    %v1473 = vadd.f32 %v1459, %v1472
    %1474 = vdwg.mxu0
    %1475 = vmatpush.bf16.xpose.msra.mxu0 %v1058
    %1476 = vmatpush.bf16.xpose.msra.mxu0 %v1053
    %1477 = vmatpush.bf16.xpose.msra.mxu0 %v1048
    %1478 = vmatpush.bf16.xpose.msra.mxu0 %v1043
    %1479 = vmatpush.bf16.xpose.msra.mxu0 %v1038
    %1480 = vmatpush.bf16.xpose.msra.mxu0 %v1033
    %1481 = vmatpush.bf16.xpose.msra.mxu0 %v1028
    %1482 = vmatpush.bf16.xpose.msra.mxu0 %v1023
    %1483 = vmatmul.bf16.gmra.mxu0 %v373
    %v1484 = vpop.f32.mrf.mxu0
    %v1485 = vadd.f32 %v1471, %v1484
    %v1486 = vpop.f32.mrf.mxu0
    %v1487 = vadd.f32 %v1473, %v1486
    %1488 = vdwg.mxu0
    %1489 = vmatpush.bf16.xpose.msra.mxu0 %v1094
    %1490 = vmatpush.bf16.xpose.msra.mxu0 %v1089
    %1491 = vmatpush.bf16.xpose.msra.mxu0 %v1084
    %1492 = vmatpush.bf16.xpose.msra.mxu0 %v1079
    %1493 = vmatpush.bf16.xpose.msra.mxu0 %v1074
    %1494 = vmatpush.bf16.xpose.msra.mxu0 %v1069
    %1495 = vmatpush.bf16.xpose.msra.mxu0 %v1064
    %1496 = vmatpush.bf16.xpose.msra.mxu0 %v1059
    %1497 = vmatmul.bf16.gmra.mxu0 %v369
    %v1498 = vpop.f32.mrf.mxu0
    %v1499 = vadd.f32 %v344, %v1498
    %v1500 = vpop.f32.mrf.mxu0
    %v1501 = vadd.f32 %v344, %v1500
    %1502 = vdwg.mxu0
    %1503 = vmatpush.bf16.xpose.msra.mxu0 %v1095
    %1504 = vmatpush.bf16.xpose.msra.mxu0 %v1090
    %1505 = vmatpush.bf16.xpose.msra.mxu0 %v1085
    %1506 = vmatpush.bf16.xpose.msra.mxu0 %v1080
    %1507 = vmatpush.bf16.xpose.msra.mxu0 %v1075
    %1508 = vmatpush.bf16.xpose.msra.mxu0 %v1070
    %1509 = vmatpush.bf16.xpose.msra.mxu0 %v1065
    %1510 = vmatpush.bf16.xpose.msra.mxu0 %v1060
    %1511 = vmatmul.bf16.gmra.mxu0 %v370
    %v1512 = vpop.f32.mrf.mxu0
    %v1513 = vadd.f32 %v1499, %v1512
    %v1514 = vpop.f32.mrf.mxu0
    %v1515 = vadd.f32 %v1501, %v1514
    %1516 = vdwg.mxu0
    %1517 = vmatpush.bf16.xpose.msra.mxu0 %v1096
    %1518 = vmatpush.bf16.xpose.msra.mxu0 %v1091
    %1519 = vmatpush.bf16.xpose.msra.mxu0 %v1086
    %1520 = vmatpush.bf16.xpose.msra.mxu0 %v1081
    %1521 = vmatpush.bf16.xpose.msra.mxu0 %v1076
    %1522 = vmatpush.bf16.xpose.msra.mxu0 %v1071
    %1523 = vmatpush.bf16.xpose.msra.mxu0 %v1066
    %1524 = vmatpush.bf16.xpose.msra.mxu0 %v1061
    %1525 = vmatmul.bf16.gmra.mxu0 %v371
    %v1526 = vpop.f32.mrf.mxu0
    %v1527 = vadd.f32 %v1513, %v1526
    %v1528 = vpop.f32.mrf.mxu0
    %v1529 = vadd.f32 %v1515, %v1528
    %1530 = vdwg.mxu0
    %1531 = vmatpush.bf16.xpose.msra.mxu0 %v1097
    %1532 = vmatpush.bf16.xpose.msra.mxu0 %v1092
    %1533 = vmatpush.bf16.xpose.msra.mxu0 %v1087
    %1534 = vmatpush.bf16.xpose.msra.mxu0 %v1082
    %1535 = vmatpush.bf16.xpose.msra.mxu0 %v1077
    %1536 = vmatpush.bf16.xpose.msra.mxu0 %v1072
    %1537 = vmatpush.bf16.xpose.msra.mxu0 %v1067
    %1538 = vmatpush.bf16.xpose.msra.mxu0 %v1062
    %1539 = vmatmul.bf16.gmra.mxu0 %v372
    %v1540 = vpop.f32.mrf.mxu0
    %v1541 = vadd.f32 %v1527, %v1540
    %v1542 = vpop.f32.mrf.mxu0
    %v1543 = vadd.f32 %v1529, %v1542
    %1544 = vdwg.mxu0
    %1545 = vmatpush.bf16.xpose.msra.mxu0 %v1098
    %1546 = vmatpush.bf16.xpose.msra.mxu0 %v1093
    %1547 = vmatpush.bf16.xpose.msra.mxu0 %v1088
    %1548 = vmatpush.bf16.xpose.msra.mxu0 %v1083
    %1549 = vmatpush.bf16.xpose.msra.mxu0 %v1078
    %1550 = vmatpush.bf16.xpose.msra.mxu0 %v1073
    %1551 = vmatpush.bf16.xpose.msra.mxu0 %v1068
    %1552 = vmatpush.bf16.xpose.msra.mxu0 %v1063
    %1553 = vmatmul.bf16.gmra.mxu0 %v373
    %v1554 = vpop.f32.mrf.mxu0
    %v1555 = vadd.f32 %v1541, %v1554
    %v1556 = vpop.f32.mrf.mxu0
    %v1557 = vadd.f32 %v1543, %v1556
    %1558 = vdwg.mxu0
    %1559 = vmatpush.bf16.xpose.msra.mxu0 %v1134
    %1560 = vmatpush.bf16.xpose.msra.mxu0 %v1129
    %1561 = vmatpush.bf16.xpose.msra.mxu0 %v1124
    %1562 = vmatpush.bf16.xpose.msra.mxu0 %v1119
    %1563 = vmatpush.bf16.xpose.msra.mxu0 %v1114
    %1564 = vmatpush.bf16.xpose.msra.mxu0 %v1109
    %1565 = vmatpush.bf16.xpose.msra.mxu0 %v1104
    %1566 = vmatpush.bf16.xpose.msra.mxu0 %v1099
    %1567 = vmatmul.bf16.gmra.mxu0 %v369
    %v1568 = vpop.f32.mrf.mxu0
    %v1569 = vadd.f32 %v345, %v1568
    %v1570 = vpop.f32.mrf.mxu0
    %v1571 = vadd.f32 %v345, %v1570
    %1572 = vdwg.mxu0
    %1573 = vmatpush.bf16.xpose.msra.mxu0 %v1135
    %1574 = vmatpush.bf16.xpose.msra.mxu0 %v1130
    %1575 = vmatpush.bf16.xpose.msra.mxu0 %v1125
    %1576 = vmatpush.bf16.xpose.msra.mxu0 %v1120
    %1577 = vmatpush.bf16.xpose.msra.mxu0 %v1115
    %1578 = vmatpush.bf16.xpose.msra.mxu0 %v1110
    %1579 = vmatpush.bf16.xpose.msra.mxu0 %v1105
    %1580 = vmatpush.bf16.xpose.msra.mxu0 %v1100
    %1581 = vmatmul.bf16.gmra.mxu0 %v370
    %v1582 = vpop.f32.mrf.mxu0
    %v1583 = vadd.f32 %v1569, %v1582
    %v1584 = vpop.f32.mrf.mxu0
    %v1585 = vadd.f32 %v1571, %v1584
    %1586 = vdwg.mxu0
    %1587 = vmatpush.bf16.xpose.msra.mxu0 %v1136
    %1588 = vmatpush.bf16.xpose.msra.mxu0 %v1131
    %1589 = vmatpush.bf16.xpose.msra.mxu0 %v1126
    %1590 = vmatpush.bf16.xpose.msra.mxu0 %v1121
    %1591 = vmatpush.bf16.xpose.msra.mxu0 %v1116
    %1592 = vmatpush.bf16.xpose.msra.mxu0 %v1111
    %1593 = vmatpush.bf16.xpose.msra.mxu0 %v1106
    %1594 = vmatpush.bf16.xpose.msra.mxu0 %v1101
    %1595 = vmatmul.bf16.gmra.mxu0 %v371
    %v1596 = vpop.f32.mrf.mxu0
    %v1597 = vadd.f32 %v1583, %v1596
    %v1598 = vpop.f32.mrf.mxu0
    %v1599 = vadd.f32 %v1585, %v1598
    %1600 = vdwg.mxu0
    %1601 = vmatpush.bf16.xpose.msra.mxu0 %v1137
    %1602 = vmatpush.bf16.xpose.msra.mxu0 %v1132
    %1603 = vmatpush.bf16.xpose.msra.mxu0 %v1127
    %1604 = vmatpush.bf16.xpose.msra.mxu0 %v1122
    %1605 = vmatpush.bf16.xpose.msra.mxu0 %v1117
    %1606 = vmatpush.bf16.xpose.msra.mxu0 %v1112
    %1607 = vmatpush.bf16.xpose.msra.mxu0 %v1107
    %1608 = vmatpush.bf16.xpose.msra.mxu0 %v1102
    %1609 = vmatmul.bf16.gmra.mxu0 %v372
    %v1610 = vpop.f32.mrf.mxu0
    %v1611 = vadd.f32 %v1597, %v1610
    %v1612 = vpop.f32.mrf.mxu0
    %v1613 = vadd.f32 %v1599, %v1612
    %1614 = vdwg.mxu0
    %1615 = vmatpush.bf16.xpose.msra.mxu0 %v1138
    %1616 = vmatpush.bf16.xpose.msra.mxu0 %v1133
    %1617 = vmatpush.bf16.xpose.msra.mxu0 %v1128
    %1618 = vmatpush.bf16.xpose.msra.mxu0 %v1123
    %1619 = vmatpush.bf16.xpose.msra.mxu0 %v1118
    %1620 = vmatpush.bf16.xpose.msra.mxu0 %v1113
    %1621 = vmatpush.bf16.xpose.msra.mxu0 %v1108
    %1622 = vmatpush.bf16.xpose.msra.mxu0 %v1103
    %1623 = vmatmul.bf16.gmra.mxu0 %v373
    %v1624 = vpop.f32.mrf.mxu0
    %v1625 = vadd.f32 %v1611, %v1624
    %v1626 = vpop.f32.mrf.mxu0
    %v1627 = vadd.f32 %v1613, %v1626
    %1628 = vdwg.mxu0
    %1629 = vmatpush.bf16.xpose.msra.mxu0 %v1174
    %1630 = vmatpush.bf16.xpose.msra.mxu0 %v1169
    %1631 = vmatpush.bf16.xpose.msra.mxu0 %v1164
    %1632 = vmatpush.bf16.xpose.msra.mxu0 %v1159
    %1633 = vmatpush.bf16.xpose.msra.mxu0 %v1154
    %1634 = vmatpush.bf16.xpose.msra.mxu0 %v1149
    %1635 = vmatpush.bf16.xpose.msra.mxu0 %v1144
    %1636 = vmatpush.bf16.xpose.msra.mxu0 %v1139
    %1637 = vmatmul.bf16.gmra.mxu0 %v369
    %v1638 = vpop.f32.mrf.mxu0
    %v1639 = vadd.f32 %v346, %v1638
    %v1640 = vpop.f32.mrf.mxu0
    %v1641 = vadd.f32 %v346, %v1640
    %1642 = vdwg.mxu0
    %1643 = vmatpush.bf16.xpose.msra.mxu0 %v1175
    %1644 = vmatpush.bf16.xpose.msra.mxu0 %v1170
    %1645 = vmatpush.bf16.xpose.msra.mxu0 %v1165
    %1646 = vmatpush.bf16.xpose.msra.mxu0 %v1160
    %1647 = vmatpush.bf16.xpose.msra.mxu0 %v1155
    %1648 = vmatpush.bf16.xpose.msra.mxu0 %v1150
    %1649 = vmatpush.bf16.xpose.msra.mxu0 %v1145
    %1650 = vmatpush.bf16.xpose.msra.mxu0 %v1140
    %1651 = vmatmul.bf16.gmra.mxu0 %v370
    %v1652 = vpop.f32.mrf.mxu0
    %v1653 = vadd.f32 %v1639, %v1652
    %v1654 = vpop.f32.mrf.mxu0
    %v1655 = vadd.f32 %v1641, %v1654
    %1656 = vdwg.mxu0
    %1657 = vmatpush.bf16.xpose.msra.mxu0 %v1176
    %1658 = vmatpush.bf16.xpose.msra.mxu0 %v1171
    %1659 = vmatpush.bf16.xpose.msra.mxu0 %v1166
    %1660 = vmatpush.bf16.xpose.msra.mxu0 %v1161
    %1661 = vmatpush.bf16.xpose.msra.mxu0 %v1156
    %1662 = vmatpush.bf16.xpose.msra.mxu0 %v1151
    %1663 = vmatpush.bf16.xpose.msra.mxu0 %v1146
    %1664 = vmatpush.bf16.xpose.msra.mxu0 %v1141
    %1665 = vmatmul.bf16.gmra.mxu0 %v371
    %v1666 = vpop.f32.mrf.mxu0
    %v1667 = vadd.f32 %v1653, %v1666
    %v1668 = vpop.f32.mrf.mxu0
    %v1669 = vadd.f32 %v1655, %v1668
    %1670 = vdwg.mxu0
    %1671 = vmatpush.bf16.xpose.msra.mxu0 %v1177
    %1672 = vmatpush.bf16.xpose.msra.mxu0 %v1172
    %1673 = vmatpush.bf16.xpose.msra.mxu0 %v1167
    %1674 = vmatpush.bf16.xpose.msra.mxu0 %v1162
    %1675 = vmatpush.bf16.xpose.msra.mxu0 %v1157
    %1676 = vmatpush.bf16.xpose.msra.mxu0 %v1152
    %1677 = vmatpush.bf16.xpose.msra.mxu0 %v1147
    %1678 = vmatpush.bf16.xpose.msra.mxu0 %v1142
    %1679 = vmatmul.bf16.gmra.mxu0 %v372
    %v1680 = vpop.f32.mrf.mxu0
    %v1681 = vadd.f32 %v1667, %v1680
    %v1682 = vpop.f32.mrf.mxu0
    %v1683 = vadd.f32 %v1669, %v1682
    %1684 = vdwg.mxu0
    %1685 = vmatpush.bf16.xpose.msra.mxu0 %v1178
    %1686 = vmatpush.bf16.xpose.msra.mxu0 %v1173
    %1687 = vmatpush.bf16.xpose.msra.mxu0 %v1168
    %1688 = vmatpush.bf16.xpose.msra.mxu0 %v1163
    %1689 = vmatpush.bf16.xpose.msra.mxu0 %v1158
    %1690 = vmatpush.bf16.xpose.msra.mxu0 %v1153
    %1691 = vmatpush.bf16.xpose.msra.mxu0 %v1148
    %1692 = vmatpush.bf16.xpose.msra.mxu0 %v1143
    %1693 = vmatmul.bf16.gmra.mxu0 %v373
    %v1694 = vpop.f32.mrf.mxu0
    %v1695 = vadd.f32 %v1681, %v1694
    %v1696 = vpop.f32.mrf.mxu0
    %v1697 = vadd.f32 %v1683, %v1696
    %1698 = vdwg.mxu0
    %1699 = vmatpush.bf16.xpose.msra.mxu0 %v1214
    %1700 = vmatpush.bf16.xpose.msra.mxu0 %v1209
    %1701 = vmatpush.bf16.xpose.msra.mxu0 %v1204
    %1702 = vmatpush.bf16.xpose.msra.mxu0 %v1199
    %1703 = vmatpush.bf16.xpose.msra.mxu0 %v1194
    %1704 = vmatpush.bf16.xpose.msra.mxu0 %v1189
    %1705 = vmatpush.bf16.xpose.msra.mxu0 %v1184
    %1706 = vmatpush.bf16.xpose.msra.mxu0 %v1179
    %1707 = vmatmul.bf16.gmra.mxu0 %v369
    %v1708 = vpop.f32.mrf.mxu0
    %v1709 = vadd.f32 %v347, %v1708
    %v1710 = vpop.f32.mrf.mxu0
    %v1711 = vadd.f32 %v347, %v1710
    %1712 = vdwg.mxu0
    %1713 = vmatpush.bf16.xpose.msra.mxu0 %v1215
    %1714 = vmatpush.bf16.xpose.msra.mxu0 %v1210
    %1715 = vmatpush.bf16.xpose.msra.mxu0 %v1205
    %1716 = vmatpush.bf16.xpose.msra.mxu0 %v1200
    %1717 = vmatpush.bf16.xpose.msra.mxu0 %v1195
    %1718 = vmatpush.bf16.xpose.msra.mxu0 %v1190
    %1719 = vmatpush.bf16.xpose.msra.mxu0 %v1185
    %1720 = vmatpush.bf16.xpose.msra.mxu0 %v1180
    %1721 = vmatmul.bf16.gmra.mxu0 %v370
    %v1722 = vpop.f32.mrf.mxu0
    %v1723 = vadd.f32 %v1709, %v1722
    %v1724 = vpop.f32.mrf.mxu0
    %v1725 = vadd.f32 %v1711, %v1724
    %1726 = vdwg.mxu0
    %1727 = vmatpush.bf16.xpose.msra.mxu0 %v1216
    %1728 = vmatpush.bf16.xpose.msra.mxu0 %v1211
    %1729 = vmatpush.bf16.xpose.msra.mxu0 %v1206
    %1730 = vmatpush.bf16.xpose.msra.mxu0 %v1201
    %1731 = vmatpush.bf16.xpose.msra.mxu0 %v1196
    %1732 = vmatpush.bf16.xpose.msra.mxu0 %v1191
    %1733 = vmatpush.bf16.xpose.msra.mxu0 %v1186
    %1734 = vmatpush.bf16.xpose.msra.mxu0 %v1181
    %1735 = vmatmul.bf16.gmra.mxu0 %v371
    %v1736 = vpop.f32.mrf.mxu0
    %v1737 = vadd.f32 %v1723, %v1736
    %v1738 = vpop.f32.mrf.mxu0
    %v1739 = vadd.f32 %v1725, %v1738
    %1740 = vdwg.mxu0
    %1741 = vmatpush.bf16.xpose.msra.mxu0 %v1217
    %1742 = vmatpush.bf16.xpose.msra.mxu0 %v1212
    %1743 = vmatpush.bf16.xpose.msra.mxu0 %v1207
    %1744 = vmatpush.bf16.xpose.msra.mxu0 %v1202
    %1745 = vmatpush.bf16.xpose.msra.mxu0 %v1197
    %1746 = vmatpush.bf16.xpose.msra.mxu0 %v1192
    %1747 = vmatpush.bf16.xpose.msra.mxu0 %v1187
    %1748 = vmatpush.bf16.xpose.msra.mxu0 %v1182
    %1749 = vmatmul.bf16.gmra.mxu0 %v372
    %v1750 = vpop.f32.mrf.mxu0
    %v1751 = vadd.f32 %v1737, %v1750
    %v1752 = vpop.f32.mrf.mxu0
    %v1753 = vadd.f32 %v1739, %v1752
    %1754 = vdwg.mxu0
    %1755 = vmatpush.bf16.xpose.msra.mxu0 %v1218
    %1756 = vmatpush.bf16.xpose.msra.mxu0 %v1213
    %1757 = vmatpush.bf16.xpose.msra.mxu0 %v1208
    %1758 = vmatpush.bf16.xpose.msra.mxu0 %v1203
    %1759 = vmatpush.bf16.xpose.msra.mxu0 %v1198
    %1760 = vmatpush.bf16.xpose.msra.mxu0 %v1193
    %1761 = vmatpush.bf16.xpose.msra.mxu0 %v1188
    %1762 = vmatpush.bf16.xpose.msra.mxu0 %v1183
    %1763 = vmatmul.bf16.gmra.mxu0 %v373
    %v1764 = vpop.f32.mrf.mxu0
    %v1765 = vadd.f32 %v1751, %v1764
    %v1766 = vpop.f32.mrf.mxu0
    %v1767 = vadd.f32 %v1753, %v1766
    %1768 = vdwg.mxu0
    %v1769 = vmax.f32 %v1485, 0.0
    %v1770 = vmax.f32 %v1555, 0.0
    %v1771 = vmax.f32 %v1625, 0.0
    %v1772 = vmax.f32 %v1695, 0.0
    %v1773 = vmax.f32 %v1765, 0.0
    %v1774 = vmax.f32 %v1487, 0.0
    %v1775 = vmax.f32 %v1557, 0.0
    %v1776 = vmax.f32 %v1627, 0.0
    %v1777 = vmax.f32 %v1697, 0.0
    %v1778 = vmax.f32 %v1767, 0.0
    %v1779 = vpack.c.bf16 %v1774, %v1769
    %v1780 = vpack.c.bf16 %v1775, %v1770
    %v1781 = vpack.c.bf16 %v1776, %v1771
    %v1782 = vpack.c.bf16 %v1777, %v1772
    %v1783 = vpack.c.bf16 %v1778, %v1773
    %v1784 = vld [vmem:[#allocation8] sm:$0xff]
    %v1785 = vld [vmem:[#allocation8 + $0x8] sm:$0xff]
    %v1786 = vld [vmem:[#allocation8 + $0x10] sm:$0xf]
    %v1787 = vld [vmem:[#allocation8 + $0x14] sm:$0xff]
    %v1788 = vld [vmem:[#allocation8 + $0x1c] sm:$0xff]
    %v1789 = vld [vmem:[#allocation8 + $0x24] sm:$0xf]
    %v1790 = vld [vmem:[#allocation8 + $0x28] sm:$0xff]
    %v1791 = vld [vmem:[#allocation8 + $0x30] sm:$0xff]
    %v1792 = vld [vmem:[#allocation8 + $0x38] sm:$0xf]
    %v1793 = vld [vmem:[#allocation8 + $0x3c] sm:$0xff]
    %v1794 = vld [vmem:[#allocation8 + $0x44] sm:$0xff]
    %v1795 = vld [vmem:[#allocation8 + $0x4c] sm:$0xf]
    %v1796 = vld [vmem:[#allocation8 + $0x50] sm:$0xff]
    %v1797 = vld [vmem:[#allocation8 + $0x58] sm:$0xff]
    %v1798 = vld [vmem:[#allocation8 + $0x60] sm:$0xf]
    %v1799 = vld [vmem:[#allocation8 + $0x64] sm:$0xff]
    %v1800 = vld [vmem:[#allocation8 + $0x6c] sm:$0xff]
    %v1801 = vld [vmem:[#allocation8 + $0x74] sm:$0xf]
    %v1802 = vld [vmem:[#allocation8 + $0x78] sm:$0xff]
    %v1803 = vld [vmem:[#allocation8 + $0x80] sm:$0xff]
    %v1804 = vld [vmem:[#allocation8 + $0x88] sm:$0xf]
    %v1805 = vld [vmem:[#allocation8 + $0x8c] sm:$0xff]
    %v1806 = vld [vmem:[#allocation8 + $0x94] sm:$0xff]
    %v1807 = vld [vmem:[#allocation8 + $0x9c] sm:$0xf]
    %v1808 = vld [vmem:[#allocation8 + $0xa0] sm:$0xff]
    %v1809 = vld [vmem:[#allocation8 + $0xa8] sm:$0xff]
    %v1810 = vld [vmem:[#allocation8 + $0xb0] sm:$0xf]
    %v1811 = vld [vmem:[#allocation8 + $0xb4] sm:$0xff]
    %v1812 = vld [vmem:[#allocation8 + $0xbc] sm:$0xff]
    %v1813 = vld [vmem:[#allocation8 + $0xc4] sm:$0xf]
    %v1814 = vld [vmem:[#allocation8 + $0xc8] sm:$0xff]
    %v1815 = vld [vmem:[#allocation8 + $0xd0] sm:$0xff]
    %v1816 = vld [vmem:[#allocation8 + $0xd8] sm:$0xf]
    %v1817 = vld [vmem:[#allocation8 + $0xdc] sm:$0xff]
    %v1818 = vld [vmem:[#allocation8 + $0xe4] sm:$0xff]
    %v1819 = vld [vmem:[#allocation8 + $0xec] sm:$0xf]
    %v1820 = vld [vmem:[#allocation8 + $0xf0] sm:$0xff]
    %v1821 = vld [vmem:[#allocation8 + $0xf8] sm:$0xff]
    %v1822 = vld [vmem:[#allocation8 + $0x100] sm:$0xf]
    %v1823 = vld [vmem:[#allocation8 + $0x104] sm:$0xff]
    %v1824 = vld [vmem:[#allocation8 + $0x10c] sm:$0xff]
    %v1825 = vld [vmem:[#allocation8 + $0x114] sm:$0xf]
    %v1826 = vld [vmem:[#allocation8 + $0x118] sm:$0xff]
    %v1827 = vld [vmem:[#allocation8 + $0x120] sm:$0xff]
    %v1828 = vld [vmem:[#allocation8 + $0x128] sm:$0xf]
    %v1829 = vld [vmem:[#allocation8 + $0x12c] sm:$0xff]
    %v1830 = vld [vmem:[#allocation8 + $0x134] sm:$0xff]
    %v1831 = vld [vmem:[#allocation8 + $0x13c] sm:$0xf]
    %v1832 = vld [vmem:[#allocation8 + $0x140] sm:$0xff]
    %v1833 = vld [vmem:[#allocation8 + $0x148] sm:$0xff]
    %v1834 = vld [vmem:[#allocation8 + $0x150] sm:$0xf]
    %v1835 = vld [vmem:[#allocation8 + $0x154] sm:$0xff]
    %v1836 = vld [vmem:[#allocation8 + $0x15c] sm:$0xff]
    %v1837 = vld [vmem:[#allocation8 + $0x164] sm:$0xf]
    %v1838 = vld [vmem:[#allocation8 + $0x168] sm:$0xff]
    %v1839 = vld [vmem:[#allocation8 + $0x170] sm:$0xff]
    %v1840 = vld [vmem:[#allocation8 + $0x178] sm:$0xf]
    %v1841 = vld [vmem:[#allocation8 + $0x17c] sm:$0xff]
    %v1842 = vld [vmem:[#allocation8 + $0x184] sm:$0xff]
    %v1843 = vld [vmem:[#allocation8 + $0x18c] sm:$0xf]
    %v1844 = vld [vmem:[#allocation8 + $0x190] sm:$0xff]
    %v1845 = vld [vmem:[#allocation8 + $0x198] sm:$0xff]
    %v1846 = vld [vmem:[#allocation8 + $0x1a0] sm:$0xf]
    %v1847 = vld [vmem:[#allocation8 + $0x1a4] sm:$0xff]
    %v1848 = vld [vmem:[#allocation8 + $0x1ac] sm:$0xff]
    %v1849 = vld [vmem:[#allocation8 + $0x1b4] sm:$0xf]
    %v1850 = vld [vmem:[#allocation8 + $0x1b8] sm:$0xff]
    %v1851 = vld [vmem:[#allocation8 + $0x1c0] sm:$0xff]
    %v1852 = vld [vmem:[#allocation8 + $0x1c8] sm:$0xf]
    %v1853 = vld [vmem:[#allocation8 + $0x1cc] sm:$0xff]
    %v1854 = vld [vmem:[#allocation8 + $0x1d4] sm:$0xff]
    %v1855 = vld [vmem:[#allocation8 + $0x1dc] sm:$0xf]
    %v1856 = vld [vmem:[#allocation8 + $0x1e0] sm:$0xff]
    %v1857 = vld [vmem:[#allocation8 + $0x1e8] sm:$0xff]
    %v1858 = vld [vmem:[#allocation8 + $0x1f0] sm:$0xf]
    %v1859 = vld [vmem:[#allocation8 + $0x1f4] sm:$0xff]
    %v1860 = vld [vmem:[#allocation8 + $0x1fc] sm:$0xff]
    %v1861 = vld [vmem:[#allocation8 + $0x204] sm:$0xf]
    %v1862 = vld [vmem:[#allocation8 + $0x208] sm:$0xff]
    %v1863 = vld [vmem:[#allocation8 + $0x210] sm:$0xff]
    %v1864 = vld [vmem:[#allocation8 + $0x218] sm:$0xf]
    %v1865 = vld [vmem:[#allocation8 + $0x21c] sm:$0xff]
    %v1866 = vld [vmem:[#allocation8 + $0x224] sm:$0xff]
    %v1867 = vld [vmem:[#allocation8 + $0x22c] sm:$0xf]
    %v1868 = vld [vmem:[#allocation8 + $0x230] sm:$0xff]
    %v1869 = vld [vmem:[#allocation8 + $0x238] sm:$0xff]
    %v1870 = vld [vmem:[#allocation8 + $0x240] sm:$0xf]
    %v1871 = vld [vmem:[#allocation8 + $0x244] sm:$0xff]
    %v1872 = vld [vmem:[#allocation8 + $0x24c] sm:$0xff]
    %v1873 = vld [vmem:[#allocation8 + $0x254] sm:$0xf]
    %v1874 = vld [vmem:[#allocation8 + $0x258] sm:$0xff]
    %v1875 = vld [vmem:[#allocation8 + $0x260] sm:$0xff]
    %v1876 = vld [vmem:[#allocation8 + $0x268] sm:$0xf]
    %v1877 = vld [vmem:[#allocation8 + $0x26c] sm:$0xff]
    %v1878 = vld [vmem:[#allocation8 + $0x274] sm:$0xff]
    %v1879 = vld [vmem:[#allocation8 + $0x27c] sm:$0xf]
    %v1880 = vld [vmem:[#allocation8 + $0x280] sm:$0xff]
    %v1881 = vld [vmem:[#allocation8 + $0x288] sm:$0xff]
    %v1882 = vld [vmem:[#allocation8 + $0x290] sm:$0xf]
    %v1883 = vld [vmem:[#allocation8 + $0x294] sm:$0xff]
    %v1884 = vld [vmem:[#allocation8 + $0x29c] sm:$0xff]
    %v1885 = vld [vmem:[#allocation8 + $0x2a4] sm:$0xf]
    %v1886 = vld [vmem:[#allocation8 + $0x2a8] sm:$0xff]
    %v1887 = vld [vmem:[#allocation8 + $0x2b0] sm:$0xff]
    %v1888 = vld [vmem:[#allocation8 + $0x2b8] sm:$0xf]
    %v1889 = vld [vmem:[#allocation8 + $0x2bc] sm:$0xff]
    %v1890 = vld [vmem:[#allocation8 + $0x2c4] sm:$0xff]
    %v1891 = vld [vmem:[#allocation8 + $0x2cc] sm:$0xf]
    %v1892 = vld [vmem:[#allocation8 + $0x2d0] sm:$0xff]
    %v1893 = vld [vmem:[#allocation8 + $0x2d8] sm:$0xff]
    %v1894 = vld [vmem:[#allocation8 + $0x2e0] sm:$0xf]
    %v1895 = vld [vmem:[#allocation8 + $0x2e4] sm:$0xff]
    %v1896 = vld [vmem:[#allocation8 + $0x2ec] sm:$0xff]
    %v1897 = vld [vmem:[#allocation8 + $0x2f4] sm:$0xf]
    %v1898 = vld [vmem:[#allocation8 + $0x2f8] sm:$0xff]
    %v1899 = vld [vmem:[#allocation8 + $0x300] sm:$0xff]
    %v1900 = vld [vmem:[#allocation8 + $0x308] sm:$0xf]
    %v1901 = vld [vmem:[#allocation8 + $0x30c] sm:$0xff]
    %v1902 = vld [vmem:[#allocation8 + $0x314] sm:$0xff]
    %v1903 = vld [vmem:[#allocation8 + $0x31c] sm:$0xf]
    %v1904 = vld [vmem:[#allocation8 + $0x320] sm:$0xff]
    %v1905 = vld [vmem:[#allocation8 + $0x328] sm:$0xff]
    %v1906 = vld [vmem:[#allocation8 + $0x330] sm:$0xf]
    %v1907 = vld [vmem:[#allocation8 + $0x334] sm:$0xff]
    %v1908 = vld [vmem:[#allocation8 + $0x33c] sm:$0xff]
    %v1909 = vld [vmem:[#allocation8 + $0x344] sm:$0xf]
    %v1910 = vld [vmem:[#allocation8 + $0x348] sm:$0xff]
    %v1911 = vld [vmem:[#allocation8 + $0x350] sm:$0xff]
    %v1912 = vld [vmem:[#allocation8 + $0x358] sm:$0xf]
    %v1913 = vld [vmem:[#allocation8 + $0x35c] sm:$0xff]
    %v1914 = vld [vmem:[#allocation8 + $0x364] sm:$0xff]
    %v1915 = vld [vmem:[#allocation8 + $0x36c] sm:$0xf]
    %v1916 = vld [vmem:[#allocation8 + $0x370] sm:$0xff]
    %v1917 = vld [vmem:[#allocation8 + $0x378] sm:$0xff]
    %v1918 = vld [vmem:[#allocation8 + $0x380] sm:$0xf]
    %v1919 = vld [vmem:[#allocation8 + $0x384] sm:$0xff]
    %v1920 = vld [vmem:[#allocation8 + $0x38c] sm:$0xff]
    %v1921 = vld [vmem:[#allocation8 + $0x394] sm:$0xf]
    %v1922 = vld [vmem:[#allocation8 + $0x398] sm:$0xff]
    %v1923 = vld [vmem:[#allocation8 + $0x3a0] sm:$0xff]
    %v1924 = vld [vmem:[#allocation8 + $0x3a8] sm:$0xf]
    %v1925 = vld [vmem:[#allocation8 + $0x3ac] sm:$0xff]
    %v1926 = vld [vmem:[#allocation8 + $0x3b4] sm:$0xff]
    %v1927 = vld [vmem:[#allocation8 + $0x3bc] sm:$0xf]
    %v1928 = vld [vmem:[#allocation8 + $0x3c0] sm:$0xff]
    %v1929 = vld [vmem:[#allocation8 + $0x3c8] sm:$0xff]
    %v1930 = vld [vmem:[#allocation8 + $0x3d0] sm:$0xf]
    %v1931 = vld [vmem:[#allocation8 + $0x3d4] sm:$0xff]
    %v1932 = vld [vmem:[#allocation8 + $0x3dc] sm:$0xff]
    %v1933 = vld [vmem:[#allocation8 + $0x3e4] sm:$0xf]
    %v1934 = vld [vmem:[#allocation8 + $0x3e8] sm:$0xff]
    %v1935 = vld [vmem:[#allocation8 + $0x3f0] sm:$0xff]
    %v1936 = vld [vmem:[#allocation8 + $0x3f8] sm:$0xf]
    %v1937 = vld [vmem:[#allocation8 + $0x3fc] sm:$0xff]
    %v1938 = vld [vmem:[#allocation8 + $0x404] sm:$0xff]
    %v1939 = vld [vmem:[#allocation8 + $0x40c] sm:$0xf]
    %v1940 = vld [vmem:[#allocation8 + $0x410] sm:$0xff]
    %v1941 = vld [vmem:[#allocation8 + $0x418] sm:$0xff]
    %v1942 = vld [vmem:[#allocation8 + $0x420] sm:$0xf]
    %v1943 = vld [vmem:[#allocation8 + $0x424] sm:$0xff]
    %v1944 = vld [vmem:[#allocation8 + $0x42c] sm:$0xff]
    %v1945 = vld [vmem:[#allocation8 + $0x434] sm:$0xf]
    %v1946 = vld [vmem:[#allocation8 + $0x438] sm:$0xff]
    %v1947 = vld [vmem:[#allocation8 + $0x440] sm:$0xff]
    %v1948 = vld [vmem:[#allocation8 + $0x448] sm:$0xf]
    %v1949 = vld [vmem:[#allocation8 + $0x44c] sm:$0xff]
    %v1950 = vld [vmem:[#allocation8 + $0x454] sm:$0xff]
    %v1951 = vld [vmem:[#allocation8 + $0x45c] sm:$0xf]
    %v1952 = vld [vmem:[#allocation8 + $0x460] sm:$0xff]
    %v1953 = vld [vmem:[#allocation8 + $0x468] sm:$0xff]
    %v1954 = vld [vmem:[#allocation8 + $0x470] sm:$0xf]
    %v1955 = vld [vmem:[#allocation8 + $0x474] sm:$0xff]
    %v1956 = vld [vmem:[#allocation8 + $0x47c] sm:$0xff]
    %v1957 = vld [vmem:[#allocation8 + $0x484] sm:$0xf]
    %v1958 = vld [vmem:[#allocation8 + $0x488] sm:$0xff]
    %v1959 = vld [vmem:[#allocation8 + $0x490] sm:$0xff]
    %v1960 = vld [vmem:[#allocation8 + $0x498] sm:$0xf]
    %v1961 = vld [vmem:[#allocation8 + $0x49c] sm:$0xff]
    %v1962 = vld [vmem:[#allocation8 + $0x4a4] sm:$0xff]
    %v1963 = vld [vmem:[#allocation8 + $0x4ac] sm:$0xf]
    %v1964 = vld [vmem:[#allocation8 + $0x4b0] sm:$0xff]
    %v1965 = vld [vmem:[#allocation8 + $0x4b8] sm:$0xff]
    %v1966 = vld [vmem:[#allocation8 + $0x4c0] sm:$0xf]
    %v1967 = vld [vmem:[#allocation8 + $0x4c4] sm:$0xff]
    %v1968 = vld [vmem:[#allocation8 + $0x4cc] sm:$0xff]
    %v1969 = vld [vmem:[#allocation8 + $0x4d4] sm:$0xf]
    %v1970 = vld [vmem:[#allocation8 + $0x4d8] sm:$0xff]
    %v1971 = vld [vmem:[#allocation8 + $0x4e0] sm:$0xff]
    %v1972 = vld [vmem:[#allocation8 + $0x4e8] sm:$0xf]
    %v1973 = vld [vmem:[#allocation8 + $0x4ec] sm:$0xff]
    %v1974 = vld [vmem:[#allocation8 + $0x4f4] sm:$0xff]
    %v1975 = vld [vmem:[#allocation8 + $0x4fc] sm:$0xf]
    %v1976 = vld [vmem:[#allocation8 + $0x500] sm:$0xff]
    %v1977 = vld [vmem:[#allocation8 + $0x508] sm:$0xff]
    %v1978 = vld [vmem:[#allocation8 + $0x510] sm:$0xf]
    %v1979 = vld [vmem:[#allocation8 + $0x514] sm:$0xff]
    %v1980 = vld [vmem:[#allocation8 + $0x51c] sm:$0xff]
    %v1981 = vld [vmem:[#allocation8 + $0x524] sm:$0xf]
    %v1982 = vld [vmem:[#allocation8 + $0x528] sm:$0xff]
    %v1983 = vld [vmem:[#allocation8 + $0x530] sm:$0xff]
    %v1984 = vld [vmem:[#allocation8 + $0x538] sm:$0xf]
    %v1985 = vld [vmem:[#allocation8 + $0x53c] sm:$0xff]
    %v1986 = vld [vmem:[#allocation8 + $0x544] sm:$0xff]
    %v1987 = vld [vmem:[#allocation8 + $0x54c] sm:$0xf]
    %v1988 = vld [vmem:[#allocation8 + $0x550] sm:$0xff]
    %v1989 = vld [vmem:[#allocation8 + $0x558] sm:$0xff]
    %v1990 = vld [vmem:[#allocation8 + $0x560] sm:$0xf]
    %v1991 = vld [vmem:[#allocation8 + $0x564] sm:$0xff]
    %v1992 = vld [vmem:[#allocation8 + $0x56c] sm:$0xff]
    %v1993 = vld [vmem:[#allocation8 + $0x574] sm:$0xf]
    %v1994 = vld [vmem:[#allocation8 + $0x578] sm:$0xff]
    %v1995 = vld [vmem:[#allocation8 + $0x580] sm:$0xff]
    %v1996 = vld [vmem:[#allocation8 + $0x588] sm:$0xf]
    %v1997 = vld [vmem:[#allocation8 + $0x58c] sm:$0xff]
    %v1998 = vld [vmem:[#allocation8 + $0x594] sm:$0xff]
    %v1999 = vld [vmem:[#allocation8 + $0x59c] sm:$0xf]
    %v2000 = vld [vmem:[#allocation8 + $0x5a0] sm:$0xff]
    %v2001 = vld [vmem:[#allocation8 + $0x5a8] sm:$0xff]
    %v2002 = vld [vmem:[#allocation8 + $0x5b0] sm:$0xf]
    %v2003 = vld [vmem:[#allocation8 + $0x5b4] sm:$0xff]
    %v2004 = vld [vmem:[#allocation8 + $0x5bc] sm:$0xff]
    %v2005 = vld [vmem:[#allocation8 + $0x5c4] sm:$0xf]
    %v2006 = vld [vmem:[#allocation8 + $0x5c8] sm:$0xff]
    %v2007 = vld [vmem:[#allocation8 + $0x5d0] sm:$0xff]
    %v2008 = vld [vmem:[#allocation8 + $0x5d8] sm:$0xf]
    %v2009 = vld [vmem:[#allocation8 + $0x5dc] sm:$0xff]
    %v2010 = vld [vmem:[#allocation8 + $0x5e4] sm:$0xff]
    %v2011 = vld [vmem:[#allocation8 + $0x5ec] sm:$0xf]
    %v2012 = vld [vmem:[#allocation8 + $0x5f0] sm:$0xff]
    %v2013 = vld [vmem:[#allocation8 + $0x5f8] sm:$0xff]
    %v2014 = vld [vmem:[#allocation8 + $0x600] sm:$0xf]
    %v2015 = vld [vmem:[#allocation8 + $0x604] sm:$0xff]
    %v2016 = vld [vmem:[#allocation8 + $0x60c] sm:$0xff]
    %v2017 = vld [vmem:[#allocation8 + $0x614] sm:$0xf]
    %v2018 = vld [vmem:[#allocation8 + $0x618] sm:$0xff]
    %v2019 = vld [vmem:[#allocation8 + $0x620] sm:$0xff]
    %v2020 = vld [vmem:[#allocation8 + $0x628] sm:$0xf]
    %v2021 = vld [vmem:[#allocation8 + $0x62c] sm:$0xff]
    %v2022 = vld [vmem:[#allocation8 + $0x634] sm:$0xff]
    %v2023 = vld [vmem:[#allocation8 + $0x63c] sm:$0xf]
    %v2024 = vld [vmem:[#allocation10] sm:$0x1f]
    %v2026 = vperm.slane %v2024, 0
    %v2027 = vperm.slane %v2024, 1
    %v2028 = vperm.slane %v2024, 2
    %v2029 = vperm.slane %v2024, 3
    %v2030 = vperm.slane %v2024, 4
    %v2276 = vunpack.c.l.b16 %v1784
    %v2277 = vunpack.c.h.b16 %v1784
    %v2278 = vunpack.c.l.b16 %v1785
    %v2279 = vunpack.c.h.b16 %v1785
    %v2280 = vunpack.c.l.b16 %v1786
    %v2281 = vunpack.c.l.b16 %v1787
    %v2282 = vunpack.c.h.b16 %v1787
    %v2283 = vunpack.c.l.b16 %v1788
    %v2284 = vunpack.c.h.b16 %v1788
    %v2285 = vunpack.c.l.b16 %v1789
    %v2286 = vunpack.c.l.b16 %v1790
    %v2287 = vunpack.c.h.b16 %v1790
    %v2288 = vunpack.c.l.b16 %v1791
    %v2289 = vunpack.c.h.b16 %v1791
    %v2290 = vunpack.c.l.b16 %v1792
    %v2291 = vunpack.c.l.b16 %v1793
    %v2292 = vunpack.c.h.b16 %v1793
    %v2293 = vunpack.c.l.b16 %v1794
    %v2294 = vunpack.c.h.b16 %v1794
    %v2295 = vunpack.c.l.b16 %v1795
    %v2296 = vunpack.c.l.b16 %v1796
    %v2297 = vunpack.c.h.b16 %v1796
    %v2298 = vunpack.c.l.b16 %v1797
    %v2299 = vunpack.c.h.b16 %v1797
    %v2300 = vunpack.c.l.b16 %v1798
    %v2301 = vunpack.c.l.b16 %v1799
    %v2302 = vunpack.c.h.b16 %v1799
    %v2303 = vunpack.c.l.b16 %v1800
    %v2304 = vunpack.c.h.b16 %v1800
    %v2305 = vunpack.c.l.b16 %v1801
    %v2306 = vunpack.c.l.b16 %v1802
    %v2307 = vunpack.c.h.b16 %v1802
    %v2308 = vunpack.c.l.b16 %v1803
    %v2309 = vunpack.c.h.b16 %v1803
    %v2310 = vunpack.c.l.b16 %v1804
    %v2311 = vunpack.c.l.b16 %v1805
    %v2312 = vunpack.c.h.b16 %v1805
    %v2313 = vunpack.c.l.b16 %v1806
    %v2314 = vunpack.c.h.b16 %v1806
    %v2315 = vunpack.c.l.b16 %v1807
    %v2316 = vunpack.c.l.b16 %v1808
    %v2317 = vunpack.c.h.b16 %v1808
    %v2318 = vunpack.c.l.b16 %v1809
    %v2319 = vunpack.c.h.b16 %v1809
    %v2320 = vunpack.c.l.b16 %v1810
    %v2321 = vunpack.c.l.b16 %v1811
    %v2322 = vunpack.c.h.b16 %v1811
    %v2323 = vunpack.c.l.b16 %v1812
    %v2324 = vunpack.c.h.b16 %v1812
    %v2325 = vunpack.c.l.b16 %v1813
    %v2326 = vunpack.c.l.b16 %v1814
    %v2327 = vunpack.c.h.b16 %v1814
    %v2328 = vunpack.c.l.b16 %v1815
    %v2329 = vunpack.c.h.b16 %v1815
    %v2330 = vunpack.c.l.b16 %v1816
    %v2331 = vunpack.c.l.b16 %v1817
    %v2332 = vunpack.c.h.b16 %v1817
    %v2333 = vunpack.c.l.b16 %v1818
    %v2334 = vunpack.c.h.b16 %v1818
    %v2335 = vunpack.c.l.b16 %v1819
    %v2336 = vunpack.c.l.b16 %v1820
    %v2337 = vunpack.c.h.b16 %v1820
    %v2338 = vunpack.c.l.b16 %v1821
    %v2339 = vunpack.c.h.b16 %v1821
    %v2340 = vunpack.c.l.b16 %v1822
    %v2341 = vunpack.c.l.b16 %v1823
    %v2342 = vunpack.c.h.b16 %v1823
    %v2343 = vunpack.c.l.b16 %v1824
    %v2344 = vunpack.c.h.b16 %v1824
    %v2345 = vunpack.c.l.b16 %v1825
    %v2346 = vunpack.c.l.b16 %v1826
    %v2347 = vunpack.c.h.b16 %v1826
    %v2348 = vunpack.c.l.b16 %v1827
    %v2349 = vunpack.c.h.b16 %v1827
    %v2350 = vunpack.c.l.b16 %v1828
    %v2351 = vunpack.c.l.b16 %v1829
    %v2352 = vunpack.c.h.b16 %v1829
    %v2353 = vunpack.c.l.b16 %v1830
    %v2354 = vunpack.c.h.b16 %v1830
    %v2355 = vunpack.c.l.b16 %v1831
    %v2356 = vunpack.c.l.b16 %v1832
    %v2357 = vunpack.c.h.b16 %v1832
    %v2358 = vunpack.c.l.b16 %v1833
    %v2359 = vunpack.c.h.b16 %v1833
    %v2360 = vunpack.c.l.b16 %v1834
    %v2361 = vunpack.c.l.b16 %v1835
    %v2362 = vunpack.c.h.b16 %v1835
    %v2363 = vunpack.c.l.b16 %v1836
    %v2364 = vunpack.c.h.b16 %v1836
    %v2365 = vunpack.c.l.b16 %v1837
    %v2366 = vunpack.c.l.b16 %v1838
    %v2367 = vunpack.c.h.b16 %v1838
    %v2368 = vunpack.c.l.b16 %v1839
    %v2369 = vunpack.c.h.b16 %v1839
    %v2370 = vunpack.c.l.b16 %v1840
    %v2371 = vunpack.c.l.b16 %v1841
    %v2372 = vunpack.c.h.b16 %v1841
    %v2373 = vunpack.c.l.b16 %v1842
    %v2374 = vunpack.c.h.b16 %v1842
    %v2375 = vunpack.c.l.b16 %v1843
    %v2376 = vunpack.c.l.b16 %v1844
    %v2377 = vunpack.c.h.b16 %v1844
    %v2378 = vunpack.c.l.b16 %v1845
    %v2379 = vunpack.c.h.b16 %v1845
    %v2380 = vunpack.c.l.b16 %v1846
    %v2381 = vunpack.c.l.b16 %v1847
    %v2382 = vunpack.c.h.b16 %v1847
    %v2383 = vunpack.c.l.b16 %v1848
    %v2384 = vunpack.c.h.b16 %v1848
    %v2385 = vunpack.c.l.b16 %v1849
    %v2386 = vunpack.c.l.b16 %v1850
    %v2387 = vunpack.c.h.b16 %v1850
    %v2388 = vunpack.c.l.b16 %v1851
    %v2389 = vunpack.c.h.b16 %v1851
    %v2390 = vunpack.c.l.b16 %v1852
    %v2391 = vunpack.c.l.b16 %v1853
    %v2392 = vunpack.c.h.b16 %v1853
    %v2393 = vunpack.c.l.b16 %v1854
    %v2394 = vunpack.c.h.b16 %v1854
    %v2395 = vunpack.c.l.b16 %v1855
    %v2396 = vunpack.c.l.b16 %v1856
    %v2397 = vunpack.c.h.b16 %v1856
    %v2398 = vunpack.c.l.b16 %v1857
    %v2399 = vunpack.c.h.b16 %v1857
    %v2400 = vunpack.c.l.b16 %v1858
    %v2401 = vunpack.c.l.b16 %v1859
    %v2402 = vunpack.c.h.b16 %v1859
    %v2403 = vunpack.c.l.b16 %v1860
    %v2404 = vunpack.c.h.b16 %v1860
    %v2405 = vunpack.c.l.b16 %v1861
    %v2406 = vunpack.c.l.b16 %v1862
    %v2407 = vunpack.c.h.b16 %v1862
    %v2408 = vunpack.c.l.b16 %v1863
    %v2409 = vunpack.c.h.b16 %v1863
    %v2410 = vunpack.c.l.b16 %v1864
    %v2411 = vunpack.c.l.b16 %v1865
    %v2412 = vunpack.c.h.b16 %v1865
    %v2413 = vunpack.c.l.b16 %v1866
    %v2414 = vunpack.c.h.b16 %v1866
    %v2415 = vunpack.c.l.b16 %v1867
    %v2416 = vunpack.c.l.b16 %v1868
    %v2417 = vunpack.c.h.b16 %v1868
    %v2418 = vunpack.c.l.b16 %v1869
    %v2419 = vunpack.c.h.b16 %v1869
    %v2420 = vunpack.c.l.b16 %v1870
    %v2421 = vunpack.c.l.b16 %v1871
    %v2422 = vunpack.c.h.b16 %v1871
    %v2423 = vunpack.c.l.b16 %v1872
    %v2424 = vunpack.c.h.b16 %v1872
    %v2425 = vunpack.c.l.b16 %v1873
    %v2426 = vunpack.c.l.b16 %v1874
    %v2427 = vunpack.c.h.b16 %v1874
    %v2428 = vunpack.c.l.b16 %v1875
    %v2429 = vunpack.c.h.b16 %v1875
    %v2430 = vunpack.c.l.b16 %v1876
    %v2431 = vunpack.c.l.b16 %v1877
    %v2432 = vunpack.c.h.b16 %v1877
    %v2433 = vunpack.c.l.b16 %v1878
    %v2434 = vunpack.c.h.b16 %v1878
    %v2435 = vunpack.c.l.b16 %v1879
    %v2436 = vunpack.c.l.b16 %v1880
    %v2437 = vunpack.c.h.b16 %v1880
    %v2438 = vunpack.c.l.b16 %v1881
    %v2439 = vunpack.c.h.b16 %v1881
    %v2440 = vunpack.c.l.b16 %v1882
    %v2441 = vunpack.c.l.b16 %v1883
    %v2442 = vunpack.c.h.b16 %v1883
    %v2443 = vunpack.c.l.b16 %v1884
    %v2444 = vunpack.c.h.b16 %v1884
    %v2445 = vunpack.c.l.b16 %v1885
    %v2446 = vunpack.c.l.b16 %v1886
    %v2447 = vunpack.c.h.b16 %v1886
    %v2448 = vunpack.c.l.b16 %v1887
    %v2449 = vunpack.c.h.b16 %v1887
    %v2450 = vunpack.c.l.b16 %v1888
    %v2451 = vunpack.c.l.b16 %v1889
    %v2452 = vunpack.c.h.b16 %v1889
    %v2453 = vunpack.c.l.b16 %v1890
    %v2454 = vunpack.c.h.b16 %v1890
    %v2455 = vunpack.c.l.b16 %v1891
    %v2456 = vunpack.c.l.b16 %v1892
    %v2457 = vunpack.c.h.b16 %v1892
    %v2458 = vunpack.c.l.b16 %v1893
    %v2459 = vunpack.c.h.b16 %v1893
    %v2460 = vunpack.c.l.b16 %v1894
    %v2461 = vunpack.c.l.b16 %v1895
    %v2462 = vunpack.c.h.b16 %v1895
    %v2463 = vunpack.c.l.b16 %v1896
    %v2464 = vunpack.c.h.b16 %v1896
    %v2465 = vunpack.c.l.b16 %v1897
    %v2466 = vunpack.c.l.b16 %v1898
    %v2467 = vunpack.c.h.b16 %v1898
    %v2468 = vunpack.c.l.b16 %v1899
    %v2469 = vunpack.c.h.b16 %v1899
    %v2470 = vunpack.c.l.b16 %v1900
    %v2471 = vunpack.c.l.b16 %v1901
    %v2472 = vunpack.c.h.b16 %v1901
    %v2473 = vunpack.c.l.b16 %v1902
    %v2474 = vunpack.c.h.b16 %v1902
    %v2475 = vunpack.c.l.b16 %v1903
    %v2476 = vunpack.c.l.b16 %v1904
    %v2477 = vunpack.c.h.b16 %v1904
    %v2478 = vunpack.c.l.b16 %v1905
    %v2479 = vunpack.c.h.b16 %v1905
    %v2480 = vunpack.c.l.b16 %v1906
    %v2481 = vunpack.c.l.b16 %v1907
    %v2482 = vunpack.c.h.b16 %v1907
    %v2483 = vunpack.c.l.b16 %v1908
    %v2484 = vunpack.c.h.b16 %v1908
    %v2485 = vunpack.c.l.b16 %v1909
    %v2486 = vunpack.c.l.b16 %v1910
    %v2487 = vunpack.c.h.b16 %v1910
    %v2488 = vunpack.c.l.b16 %v1911
    %v2489 = vunpack.c.h.b16 %v1911
    %v2490 = vunpack.c.l.b16 %v1912
    %v2491 = vunpack.c.l.b16 %v1913
    %v2492 = vunpack.c.h.b16 %v1913
    %v2493 = vunpack.c.l.b16 %v1914
    %v2494 = vunpack.c.h.b16 %v1914
    %v2495 = vunpack.c.l.b16 %v1915
    %v2496 = vunpack.c.l.b16 %v1916
    %v2497 = vunpack.c.h.b16 %v1916
    %v2498 = vunpack.c.l.b16 %v1917
    %v2499 = vunpack.c.h.b16 %v1917
    %v2500 = vunpack.c.l.b16 %v1918
    %v2501 = vunpack.c.l.b16 %v1919
    %v2502 = vunpack.c.h.b16 %v1919
    %v2503 = vunpack.c.l.b16 %v1920
    %v2504 = vunpack.c.h.b16 %v1920
    %v2505 = vunpack.c.l.b16 %v1921
    %v2506 = vunpack.c.l.b16 %v1922
    %v2507 = vunpack.c.h.b16 %v1922
    %v2508 = vunpack.c.l.b16 %v1923
    %v2509 = vunpack.c.h.b16 %v1923
    %v2510 = vunpack.c.l.b16 %v1924
    %v2511 = vunpack.c.l.b16 %v1925
    %v2512 = vunpack.c.h.b16 %v1925
    %v2513 = vunpack.c.l.b16 %v1926
    %v2514 = vunpack.c.h.b16 %v1926
    %v2515 = vunpack.c.l.b16 %v1927
    %v2516 = vunpack.c.l.b16 %v1928
    %v2517 = vunpack.c.h.b16 %v1928
    %v2518 = vunpack.c.l.b16 %v1929
    %v2519 = vunpack.c.h.b16 %v1929
    %v2520 = vunpack.c.l.b16 %v1930
    %v2521 = vunpack.c.l.b16 %v1931
    %v2522 = vunpack.c.h.b16 %v1931
    %v2523 = vunpack.c.l.b16 %v1932
    %v2524 = vunpack.c.h.b16 %v1932
    %v2525 = vunpack.c.l.b16 %v1933
    %v2526 = vunpack.c.l.b16 %v1934
    %v2527 = vunpack.c.h.b16 %v1934
    %v2528 = vunpack.c.l.b16 %v1935
    %v2529 = vunpack.c.h.b16 %v1935
    %v2530 = vunpack.c.l.b16 %v1936
    %v2531 = vunpack.c.l.b16 %v1937
    %v2532 = vunpack.c.h.b16 %v1937
    %v2533 = vunpack.c.l.b16 %v1938
    %v2534 = vunpack.c.h.b16 %v1938
    %v2535 = vunpack.c.l.b16 %v1939
    %v2536 = vunpack.c.l.b16 %v1940
    %v2537 = vunpack.c.h.b16 %v1940
    %v2538 = vunpack.c.l.b16 %v1941
    %v2539 = vunpack.c.h.b16 %v1941
    %v2540 = vunpack.c.l.b16 %v1942
    %v2541 = vunpack.c.l.b16 %v1943
    %v2542 = vunpack.c.h.b16 %v1943
    %v2543 = vunpack.c.l.b16 %v1944
    %v2544 = vunpack.c.h.b16 %v1944
    %v2545 = vunpack.c.l.b16 %v1945
    %v2546 = vunpack.c.l.b16 %v1946
    %v2547 = vunpack.c.h.b16 %v1946
    %v2548 = vunpack.c.l.b16 %v1947
    %v2549 = vunpack.c.h.b16 %v1947
    %v2550 = vunpack.c.l.b16 %v1948
    %v2551 = vunpack.c.l.b16 %v1949
    %v2552 = vunpack.c.h.b16 %v1949
    %v2553 = vunpack.c.l.b16 %v1950
    %v2554 = vunpack.c.h.b16 %v1950
    %v2555 = vunpack.c.l.b16 %v1951
    %v2556 = vunpack.c.l.b16 %v1952
    %v2557 = vunpack.c.h.b16 %v1952
    %v2558 = vunpack.c.l.b16 %v1953
    %v2559 = vunpack.c.h.b16 %v1953
    %v2560 = vunpack.c.l.b16 %v1954
    %v2561 = vunpack.c.l.b16 %v1955
    %v2562 = vunpack.c.h.b16 %v1955
    %v2563 = vunpack.c.l.b16 %v1956
    %v2564 = vunpack.c.h.b16 %v1956
    %v2565 = vunpack.c.l.b16 %v1957
    %v2566 = vunpack.c.l.b16 %v1958
    %v2567 = vunpack.c.h.b16 %v1958
    %v2568 = vunpack.c.l.b16 %v1959
    %v2569 = vunpack.c.h.b16 %v1959
    %v2570 = vunpack.c.l.b16 %v1960
    %v2571 = vunpack.c.l.b16 %v1961
    %v2572 = vunpack.c.h.b16 %v1961
    %v2573 = vunpack.c.l.b16 %v1962
    %v2574 = vunpack.c.h.b16 %v1962
    %v2575 = vunpack.c.l.b16 %v1963
    %v2576 = vunpack.c.l.b16 %v1964
    %v2577 = vunpack.c.h.b16 %v1964
    %v2578 = vunpack.c.l.b16 %v1965
    %v2579 = vunpack.c.h.b16 %v1965
    %v2580 = vunpack.c.l.b16 %v1966
    %v2581 = vunpack.c.l.b16 %v1967
    %v2582 = vunpack.c.h.b16 %v1967
    %v2583 = vunpack.c.l.b16 %v1968
    %v2584 = vunpack.c.h.b16 %v1968
    %v2585 = vunpack.c.l.b16 %v1969
    %v2586 = vunpack.c.l.b16 %v1970
    %v2587 = vunpack.c.h.b16 %v1970
    %v2588 = vunpack.c.l.b16 %v1971
    %v2589 = vunpack.c.h.b16 %v1971
    %v2590 = vunpack.c.l.b16 %v1972
    %v2591 = vunpack.c.l.b16 %v1973
    %v2592 = vunpack.c.h.b16 %v1973
    %v2593 = vunpack.c.l.b16 %v1974
    %v2594 = vunpack.c.h.b16 %v1974
    %v2595 = vunpack.c.l.b16 %v1975
    %v2596 = vunpack.c.l.b16 %v1976
    %v2597 = vunpack.c.h.b16 %v1976
    %v2598 = vunpack.c.l.b16 %v1977
    %v2599 = vunpack.c.h.b16 %v1977
    %v2600 = vunpack.c.l.b16 %v1978
    %v2601 = vunpack.c.l.b16 %v1979
    %v2602 = vunpack.c.h.b16 %v1979
    %v2603 = vunpack.c.l.b16 %v1980
    %v2604 = vunpack.c.h.b16 %v1980
    %v2605 = vunpack.c.l.b16 %v1981
    %v2606 = vunpack.c.l.b16 %v1982
    %v2607 = vunpack.c.h.b16 %v1982
    %v2608 = vunpack.c.l.b16 %v1983
    %v2609 = vunpack.c.h.b16 %v1983
    %v2610 = vunpack.c.l.b16 %v1984
    %v2611 = vunpack.c.l.b16 %v1985
    %v2612 = vunpack.c.h.b16 %v1985
    %v2613 = vunpack.c.l.b16 %v1986
    %v2614 = vunpack.c.h.b16 %v1986
    %v2615 = vunpack.c.l.b16 %v1987
    %v2616 = vunpack.c.l.b16 %v1988
    %v2617 = vunpack.c.h.b16 %v1988
    %v2618 = vunpack.c.l.b16 %v1989
    %v2619 = vunpack.c.h.b16 %v1989
    %v2620 = vunpack.c.l.b16 %v1990
    %v2621 = vunpack.c.l.b16 %v1991
    %v2622 = vunpack.c.h.b16 %v1991
    %v2623 = vunpack.c.l.b16 %v1992
    %v2624 = vunpack.c.h.b16 %v1992
    %v2625 = vunpack.c.l.b16 %v1993
    %v2626 = vunpack.c.l.b16 %v1994
    %v2627 = vunpack.c.h.b16 %v1994
    %v2628 = vunpack.c.l.b16 %v1995
    %v2629 = vunpack.c.h.b16 %v1995
    %v2630 = vunpack.c.l.b16 %v1996
    %v2631 = vunpack.c.l.b16 %v1997
    %v2632 = vunpack.c.h.b16 %v1997
    %v2633 = vunpack.c.l.b16 %v1998
    %v2634 = vunpack.c.h.b16 %v1998
    %v2635 = vunpack.c.l.b16 %v1999
    %v2636 = vunpack.c.l.b16 %v2000
    %v2637 = vunpack.c.h.b16 %v2000
    %v2638 = vunpack.c.l.b16 %v2001
    %v2639 = vunpack.c.h.b16 %v2001
    %v2640 = vunpack.c.l.b16 %v2002
    %v2641 = vunpack.c.l.b16 %v2003
    %v2642 = vunpack.c.h.b16 %v2003
    %v2643 = vunpack.c.l.b16 %v2004
    %v2644 = vunpack.c.h.b16 %v2004
    %v2645 = vunpack.c.l.b16 %v2005
    %v2646 = vunpack.c.l.b16 %v2006
    %v2647 = vunpack.c.h.b16 %v2006
    %v2648 = vunpack.c.l.b16 %v2007
    %v2649 = vunpack.c.h.b16 %v2007
    %v2650 = vunpack.c.l.b16 %v2008
    %v2651 = vunpack.c.l.b16 %v2009
    %v2652 = vunpack.c.h.b16 %v2009
    %v2653 = vunpack.c.l.b16 %v2010
    %v2654 = vunpack.c.h.b16 %v2010
    %v2655 = vunpack.c.l.b16 %v2011
    %v2656 = vunpack.c.l.b16 %v2012
    %v2657 = vunpack.c.h.b16 %v2012
    %v2658 = vunpack.c.l.b16 %v2013
    %v2659 = vunpack.c.h.b16 %v2013
    %v2660 = vunpack.c.l.b16 %v2014
    %v2661 = vunpack.c.l.b16 %v2015
    %v2662 = vunpack.c.h.b16 %v2015
    %v2663 = vunpack.c.l.b16 %v2016
    %v2664 = vunpack.c.h.b16 %v2016
    %v2665 = vunpack.c.l.b16 %v2017
    %v2666 = vunpack.c.l.b16 %v2018
    %v2667 = vunpack.c.h.b16 %v2018
    %v2668 = vunpack.c.l.b16 %v2019
    %v2669 = vunpack.c.h.b16 %v2019
    %v2670 = vunpack.c.l.b16 %v2020
    %v2671 = vunpack.c.l.b16 %v2021
    %v2672 = vunpack.c.h.b16 %v2021
    %v2673 = vunpack.c.l.b16 %v2022
    %v2674 = vunpack.c.h.b16 %v2022
    %v2675 = vunpack.c.l.b16 %v2023
    %v2676 = vpack.c.b16 %v2281, %v2276
    %v2677 = vpack.c.b16 %v2282, %v2277
    %v2678 = vpack.c.b16 %v2283, %v2278
    %v2679 = vpack.c.b16 %v2284, %v2279
    %v2680 = vpack.c.b16 %v2285, %v2280
    %v2681 = vpack.c.b16 %v2291, %v2286
    %v2682 = vpack.c.b16 %v2292, %v2287
    %v2683 = vpack.c.b16 %v2293, %v2288
    %v2684 = vpack.c.b16 %v2294, %v2289
    %v2685 = vpack.c.b16 %v2295, %v2290
    %v2686 = vpack.c.b16 %v2301, %v2296
    %v2687 = vpack.c.b16 %v2302, %v2297
    %v2688 = vpack.c.b16 %v2303, %v2298
    %v2689 = vpack.c.b16 %v2304, %v2299
    %v2690 = vpack.c.b16 %v2305, %v2300
    %v2691 = vpack.c.b16 %v2311, %v2306
    %v2692 = vpack.c.b16 %v2312, %v2307
    %v2693 = vpack.c.b16 %v2313, %v2308
    %v2694 = vpack.c.b16 %v2314, %v2309
    %v2695 = vpack.c.b16 %v2315, %v2310
    %v2696 = vpack.c.b16 %v2321, %v2316
    %v2697 = vpack.c.b16 %v2322, %v2317
    %v2698 = vpack.c.b16 %v2323, %v2318
    %v2699 = vpack.c.b16 %v2324, %v2319
    %v2700 = vpack.c.b16 %v2325, %v2320
    %v2701 = vpack.c.b16 %v2331, %v2326
    %v2702 = vpack.c.b16 %v2332, %v2327
    %v2703 = vpack.c.b16 %v2333, %v2328
    %v2704 = vpack.c.b16 %v2334, %v2329
    %v2705 = vpack.c.b16 %v2335, %v2330
    %v2706 = vpack.c.b16 %v2341, %v2336
    %v2707 = vpack.c.b16 %v2342, %v2337
    %v2708 = vpack.c.b16 %v2343, %v2338
    %v2709 = vpack.c.b16 %v2344, %v2339
    %v2710 = vpack.c.b16 %v2345, %v2340
    %v2711 = vpack.c.b16 %v2351, %v2346
    %v2712 = vpack.c.b16 %v2352, %v2347
    %v2713 = vpack.c.b16 %v2353, %v2348
    %v2714 = vpack.c.b16 %v2354, %v2349
    %v2715 = vpack.c.b16 %v2355, %v2350
    %v2716 = vpack.c.b16 %v2361, %v2356
    %v2717 = vpack.c.b16 %v2362, %v2357
    %v2718 = vpack.c.b16 %v2363, %v2358
    %v2719 = vpack.c.b16 %v2364, %v2359
    %v2720 = vpack.c.b16 %v2365, %v2360
    %v2721 = vpack.c.b16 %v2371, %v2366
    %v2722 = vpack.c.b16 %v2372, %v2367
    %v2723 = vpack.c.b16 %v2373, %v2368
    %v2724 = vpack.c.b16 %v2374, %v2369
    %v2725 = vpack.c.b16 %v2375, %v2370
    %v2726 = vpack.c.b16 %v2381, %v2376
    %v2727 = vpack.c.b16 %v2382, %v2377
    %v2728 = vpack.c.b16 %v2383, %v2378
    %v2729 = vpack.c.b16 %v2384, %v2379
    %v2730 = vpack.c.b16 %v2385, %v2380
    %v2731 = vpack.c.b16 %v2391, %v2386
    %v2732 = vpack.c.b16 %v2392, %v2387
    %v2733 = vpack.c.b16 %v2393, %v2388
    %v2734 = vpack.c.b16 %v2394, %v2389
    %v2735 = vpack.c.b16 %v2395, %v2390
    %v2736 = vpack.c.b16 %v2401, %v2396
    %v2737 = vpack.c.b16 %v2402, %v2397
    %v2738 = vpack.c.b16 %v2403, %v2398
    %v2739 = vpack.c.b16 %v2404, %v2399
    %v2740 = vpack.c.b16 %v2405, %v2400
    %v2741 = vpack.c.b16 %v2411, %v2406
    %v2742 = vpack.c.b16 %v2412, %v2407
    %v2743 = vpack.c.b16 %v2413, %v2408
    %v2744 = vpack.c.b16 %v2414, %v2409
    %v2745 = vpack.c.b16 %v2415, %v2410
    %v2746 = vpack.c.b16 %v2421, %v2416
    %v2747 = vpack.c.b16 %v2422, %v2417
    %v2748 = vpack.c.b16 %v2423, %v2418
    %v2749 = vpack.c.b16 %v2424, %v2419
    %v2750 = vpack.c.b16 %v2425, %v2420
    %v2751 = vpack.c.b16 %v2431, %v2426
    %v2752 = vpack.c.b16 %v2432, %v2427
    %v2753 = vpack.c.b16 %v2433, %v2428
    %v2754 = vpack.c.b16 %v2434, %v2429
    %v2755 = vpack.c.b16 %v2435, %v2430
    %v2756 = vpack.c.b16 %v2441, %v2436
    %v2757 = vpack.c.b16 %v2442, %v2437
    %v2758 = vpack.c.b16 %v2443, %v2438
    %v2759 = vpack.c.b16 %v2444, %v2439
    %v2760 = vpack.c.b16 %v2445, %v2440
    %v2761 = vpack.c.b16 %v2451, %v2446
    %v2762 = vpack.c.b16 %v2452, %v2447
    %v2763 = vpack.c.b16 %v2453, %v2448
    %v2764 = vpack.c.b16 %v2454, %v2449
    %v2765 = vpack.c.b16 %v2455, %v2450
    %v2766 = vpack.c.b16 %v2461, %v2456
    %v2767 = vpack.c.b16 %v2462, %v2457
    %v2768 = vpack.c.b16 %v2463, %v2458
    %v2769 = vpack.c.b16 %v2464, %v2459
    %v2770 = vpack.c.b16 %v2465, %v2460
    %v2771 = vpack.c.b16 %v2471, %v2466
    %v2772 = vpack.c.b16 %v2472, %v2467
    %v2773 = vpack.c.b16 %v2473, %v2468
    %v2774 = vpack.c.b16 %v2474, %v2469
    %v2775 = vpack.c.b16 %v2475, %v2470
    %v2776 = vpack.c.b16 %v2481, %v2476
    %v2777 = vpack.c.b16 %v2482, %v2477
    %v2778 = vpack.c.b16 %v2483, %v2478
    %v2779 = vpack.c.b16 %v2484, %v2479
    %v2780 = vpack.c.b16 %v2485, %v2480
    %v2781 = vpack.c.b16 %v2491, %v2486
    %v2782 = vpack.c.b16 %v2492, %v2487
    %v2783 = vpack.c.b16 %v2493, %v2488
    %v2784 = vpack.c.b16 %v2494, %v2489
    %v2785 = vpack.c.b16 %v2495, %v2490
    %v2786 = vpack.c.b16 %v2501, %v2496
    %v2787 = vpack.c.b16 %v2502, %v2497
    %v2788 = vpack.c.b16 %v2503, %v2498
    %v2789 = vpack.c.b16 %v2504, %v2499
    %v2790 = vpack.c.b16 %v2505, %v2500
    %v2791 = vpack.c.b16 %v2511, %v2506
    %v2792 = vpack.c.b16 %v2512, %v2507
    %v2793 = vpack.c.b16 %v2513, %v2508
    %v2794 = vpack.c.b16 %v2514, %v2509
    %v2795 = vpack.c.b16 %v2515, %v2510
    %v2796 = vpack.c.b16 %v2521, %v2516
    %v2797 = vpack.c.b16 %v2522, %v2517
    %v2798 = vpack.c.b16 %v2523, %v2518
    %v2799 = vpack.c.b16 %v2524, %v2519
    %v2800 = vpack.c.b16 %v2525, %v2520
    %v2801 = vpack.c.b16 %v2531, %v2526
    %v2802 = vpack.c.b16 %v2532, %v2527
    %v2803 = vpack.c.b16 %v2533, %v2528
    %v2804 = vpack.c.b16 %v2534, %v2529
    %v2805 = vpack.c.b16 %v2535, %v2530
    %v2806 = vpack.c.b16 %v2541, %v2536
    %v2807 = vpack.c.b16 %v2542, %v2537
    %v2808 = vpack.c.b16 %v2543, %v2538
    %v2809 = vpack.c.b16 %v2544, %v2539
    %v2810 = vpack.c.b16 %v2545, %v2540
    %v2811 = vpack.c.b16 %v2551, %v2546
    %v2812 = vpack.c.b16 %v2552, %v2547
    %v2813 = vpack.c.b16 %v2553, %v2548
    %v2814 = vpack.c.b16 %v2554, %v2549
    %v2815 = vpack.c.b16 %v2555, %v2550
    %v2816 = vpack.c.b16 %v2561, %v2556
    %v2817 = vpack.c.b16 %v2562, %v2557
    %v2818 = vpack.c.b16 %v2563, %v2558
    %v2819 = vpack.c.b16 %v2564, %v2559
    %v2820 = vpack.c.b16 %v2565, %v2560
    %v2821 = vpack.c.b16 %v2571, %v2566
    %v2822 = vpack.c.b16 %v2572, %v2567
    %v2823 = vpack.c.b16 %v2573, %v2568
    %v2824 = vpack.c.b16 %v2574, %v2569
    %v2825 = vpack.c.b16 %v2575, %v2570
    %v2826 = vpack.c.b16 %v2581, %v2576
    %v2827 = vpack.c.b16 %v2582, %v2577
    %v2828 = vpack.c.b16 %v2583, %v2578
    %v2829 = vpack.c.b16 %v2584, %v2579
    %v2830 = vpack.c.b16 %v2585, %v2580
    %v2831 = vpack.c.b16 %v2591, %v2586
    %v2832 = vpack.c.b16 %v2592, %v2587
    %v2833 = vpack.c.b16 %v2593, %v2588
    %v2834 = vpack.c.b16 %v2594, %v2589
    %v2835 = vpack.c.b16 %v2595, %v2590
    %v2836 = vpack.c.b16 %v2601, %v2596
    %v2837 = vpack.c.b16 %v2602, %v2597
    %v2838 = vpack.c.b16 %v2603, %v2598
    %v2839 = vpack.c.b16 %v2604, %v2599
    %v2840 = vpack.c.b16 %v2605, %v2600
    %v2841 = vpack.c.b16 %v2611, %v2606
    %v2842 = vpack.c.b16 %v2612, %v2607
    %v2843 = vpack.c.b16 %v2613, %v2608
    %v2844 = vpack.c.b16 %v2614, %v2609
    %v2845 = vpack.c.b16 %v2615, %v2610
    %v2846 = vpack.c.b16 %v2621, %v2616
    %v2847 = vpack.c.b16 %v2622, %v2617
    %v2848 = vpack.c.b16 %v2623, %v2618
    %v2849 = vpack.c.b16 %v2624, %v2619
    %v2850 = vpack.c.b16 %v2625, %v2620
    %v2851 = vpack.c.b16 %v2631, %v2626
    %v2852 = vpack.c.b16 %v2632, %v2627
    %v2853 = vpack.c.b16 %v2633, %v2628
    %v2854 = vpack.c.b16 %v2634, %v2629
    %v2855 = vpack.c.b16 %v2635, %v2630
    %v2856 = vpack.c.b16 %v2641, %v2636
    %v2857 = vpack.c.b16 %v2642, %v2637
    %v2858 = vpack.c.b16 %v2643, %v2638
    %v2859 = vpack.c.b16 %v2644, %v2639
    %v2860 = vpack.c.b16 %v2645, %v2640
    %v2861 = vpack.c.b16 %v2651, %v2646
    %v2862 = vpack.c.b16 %v2652, %v2647
    %v2863 = vpack.c.b16 %v2653, %v2648
    %v2864 = vpack.c.b16 %v2654, %v2649
    %v2865 = vpack.c.b16 %v2655, %v2650
    %v2866 = vpack.c.b16 %v2661, %v2656
    %v2867 = vpack.c.b16 %v2662, %v2657
    %v2868 = vpack.c.b16 %v2663, %v2658
    %v2869 = vpack.c.b16 %v2664, %v2659
    %v2870 = vpack.c.b16 %v2665, %v2660
    %v2871 = vpack.c.b16 %v2671, %v2666
    %v2872 = vpack.c.b16 %v2672, %v2667
    %v2873 = vpack.c.b16 %v2673, %v2668
    %v2874 = vpack.c.b16 %v2674, %v2669
    %v2875 = vpack.c.b16 %v2675, %v2670
    %3076 = vmatpush.bf16.xpose.msra.mxu0 %v2711
    %3077 = vmatpush.bf16.xpose.msra.mxu0 %v2706
    %3078 = vmatpush.bf16.xpose.msra.mxu0 %v2701
    %3079 = vmatpush.bf16.xpose.msra.mxu0 %v2696
    %3080 = vmatpush.bf16.xpose.msra.mxu0 %v2691
    %3081 = vmatpush.bf16.xpose.msra.mxu0 %v2686
    %3082 = vmatpush.bf16.xpose.msra.mxu0 %v2681
    %3083 = vmatpush.bf16.xpose.msra.mxu0 %v2676
    %3084 = vmatmul.bf16.gmra.mxu0 %v1779
    %v3085 = vpop.f32.mrf.mxu0
    %v3086 = vadd.f32 %v2026, %v3085
    %v3087 = vpop.f32.mrf.mxu0
    %v3088 = vadd.f32 %v2026, %v3087
    %3089 = vdwg.mxu0
    %3090 = vmatpush.bf16.xpose.msra.mxu0 %v2712
    %3091 = vmatpush.bf16.xpose.msra.mxu0 %v2707
    %3092 = vmatpush.bf16.xpose.msra.mxu0 %v2702
    %3093 = vmatpush.bf16.xpose.msra.mxu0 %v2697
    %3094 = vmatpush.bf16.xpose.msra.mxu0 %v2692
    %3095 = vmatpush.bf16.xpose.msra.mxu0 %v2687
    %3096 = vmatpush.bf16.xpose.msra.mxu0 %v2682
    %3097 = vmatpush.bf16.xpose.msra.mxu0 %v2677
    %3098 = vmatmul.bf16.gmra.mxu0 %v1780
    %v3099 = vpop.f32.mrf.mxu0
    %v3100 = vadd.f32 %v3086, %v3099
    %v3101 = vpop.f32.mrf.mxu0
    %v3102 = vadd.f32 %v3088, %v3101
    %3103 = vdwg.mxu0
    %3104 = vmatpush.bf16.xpose.msra.mxu0 %v2713
    %3105 = vmatpush.bf16.xpose.msra.mxu0 %v2708
    %3106 = vmatpush.bf16.xpose.msra.mxu0 %v2703
    %3107 = vmatpush.bf16.xpose.msra.mxu0 %v2698
    %3108 = vmatpush.bf16.xpose.msra.mxu0 %v2693
    %3109 = vmatpush.bf16.xpose.msra.mxu0 %v2688
    %3110 = vmatpush.bf16.xpose.msra.mxu0 %v2683
    %3111 = vmatpush.bf16.xpose.msra.mxu0 %v2678
    %3112 = vmatmul.bf16.gmra.mxu0 %v1781
    %v3113 = vpop.f32.mrf.mxu0
    %v3114 = vadd.f32 %v3100, %v3113
    %v3115 = vpop.f32.mrf.mxu0
    %v3116 = vadd.f32 %v3102, %v3115
    %3117 = vdwg.mxu0
    %3118 = vmatpush.bf16.xpose.msra.mxu0 %v2714
    %3119 = vmatpush.bf16.xpose.msra.mxu0 %v2709
    %3120 = vmatpush.bf16.xpose.msra.mxu0 %v2704
    %3121 = vmatpush.bf16.xpose.msra.mxu0 %v2699
    %3122 = vmatpush.bf16.xpose.msra.mxu0 %v2694
    %3123 = vmatpush.bf16.xpose.msra.mxu0 %v2689
    %3124 = vmatpush.bf16.xpose.msra.mxu0 %v2684
    %3125 = vmatpush.bf16.xpose.msra.mxu0 %v2679
    %3126 = vmatmul.bf16.gmra.mxu0 %v1782
    %v3127 = vpop.f32.mrf.mxu0
    %v3128 = vadd.f32 %v3114, %v3127
    %v3129 = vpop.f32.mrf.mxu0
    %v3130 = vadd.f32 %v3116, %v3129
    %3131 = vdwg.mxu0
    %3132 = vmatpush.bf16.xpose.msra.mxu0 %v2715
    %3133 = vmatpush.bf16.xpose.msra.mxu0 %v2710
    %3134 = vmatpush.bf16.xpose.msra.mxu0 %v2705
    %3135 = vmatpush.bf16.xpose.msra.mxu0 %v2700
    %3136 = vmatpush.bf16.xpose.msra.mxu0 %v2695
    %3137 = vmatpush.bf16.xpose.msra.mxu0 %v2690
    %3138 = vmatpush.bf16.xpose.msra.mxu0 %v2685
    %3139 = vmatpush.bf16.xpose.msra.mxu0 %v2680
    %3140 = vmatmul.bf16.gmra.mxu0 %v1783
    %v3141 = vpop.f32.mrf.mxu0
    %v3142 = vadd.f32 %v3128, %v3141
    %v3143 = vpop.f32.mrf.mxu0
    %v3144 = vadd.f32 %v3130, %v3143
    %3145 = vdwg.mxu0
    %3146 = vmatpush.bf16.xpose.msra.mxu0 %v2751
    %3147 = vmatpush.bf16.xpose.msra.mxu0 %v2746
    %3148 = vmatpush.bf16.xpose.msra.mxu0 %v2741
    %3149 = vmatpush.bf16.xpose.msra.mxu0 %v2736
    %3150 = vmatpush.bf16.xpose.msra.mxu0 %v2731
    %3151 = vmatpush.bf16.xpose.msra.mxu0 %v2726
    %3152 = vmatpush.bf16.xpose.msra.mxu0 %v2721
    %3153 = vmatpush.bf16.xpose.msra.mxu0 %v2716
    %3154 = vmatmul.bf16.gmra.mxu0 %v1779
    %v3155 = vpop.f32.mrf.mxu0
    %v3156 = vadd.f32 %v2027, %v3155
    %v3157 = vpop.f32.mrf.mxu0
    %v3158 = vadd.f32 %v2027, %v3157
    %3159 = vdwg.mxu0
    %3160 = vmatpush.bf16.xpose.msra.mxu0 %v2752
    %3161 = vmatpush.bf16.xpose.msra.mxu0 %v2747
    %3162 = vmatpush.bf16.xpose.msra.mxu0 %v2742
    %3163 = vmatpush.bf16.xpose.msra.mxu0 %v2737
    %3164 = vmatpush.bf16.xpose.msra.mxu0 %v2732
    %3165 = vmatpush.bf16.xpose.msra.mxu0 %v2727
    %3166 = vmatpush.bf16.xpose.msra.mxu0 %v2722
    %3167 = vmatpush.bf16.xpose.msra.mxu0 %v2717
    %3168 = vmatmul.bf16.gmra.mxu0 %v1780
    %v3169 = vpop.f32.mrf.mxu0
    %v3170 = vadd.f32 %v3156, %v3169
    %v3171 = vpop.f32.mrf.mxu0
    %v3172 = vadd.f32 %v3158, %v3171
    %3173 = vdwg.mxu0
    %3174 = vmatpush.bf16.xpose.msra.mxu0 %v2753
    %3175 = vmatpush.bf16.xpose.msra.mxu0 %v2748
    %3176 = vmatpush.bf16.xpose.msra.mxu0 %v2743
    %3177 = vmatpush.bf16.xpose.msra.mxu0 %v2738
    %3178 = vmatpush.bf16.xpose.msra.mxu0 %v2733
    %3179 = vmatpush.bf16.xpose.msra.mxu0 %v2728
    %3180 = vmatpush.bf16.xpose.msra.mxu0 %v2723
    %3181 = vmatpush.bf16.xpose.msra.mxu0 %v2718
    %3182 = vmatmul.bf16.gmra.mxu0 %v1781
    %v3183 = vpop.f32.mrf.mxu0
    %v3184 = vadd.f32 %v3170, %v3183
    %v3185 = vpop.f32.mrf.mxu0
    %v3186 = vadd.f32 %v3172, %v3185
    %3187 = vdwg.mxu0
    %3188 = vmatpush.bf16.xpose.msra.mxu0 %v2754
    %3189 = vmatpush.bf16.xpose.msra.mxu0 %v2749
    %3190 = vmatpush.bf16.xpose.msra.mxu0 %v2744
    %3191 = vmatpush.bf16.xpose.msra.mxu0 %v2739
    %3192 = vmatpush.bf16.xpose.msra.mxu0 %v2734
    %3193 = vmatpush.bf16.xpose.msra.mxu0 %v2729
    %3194 = vmatpush.bf16.xpose.msra.mxu0 %v2724
    %3195 = vmatpush.bf16.xpose.msra.mxu0 %v2719
    %3196 = vmatmul.bf16.gmra.mxu0 %v1782
    %v3197 = vpop.f32.mrf.mxu0
    %v3198 = vadd.f32 %v3184, %v3197
    %v3199 = vpop.f32.mrf.mxu0
    %v3200 = vadd.f32 %v3186, %v3199
    %3201 = vdwg.mxu0
    %3202 = vmatpush.bf16.xpose.msra.mxu0 %v2755
    %3203 = vmatpush.bf16.xpose.msra.mxu0 %v2750
    %3204 = vmatpush.bf16.xpose.msra.mxu0 %v2745
    %3205 = vmatpush.bf16.xpose.msra.mxu0 %v2740
    %3206 = vmatpush.bf16.xpose.msra.mxu0 %v2735
    %3207 = vmatpush.bf16.xpose.msra.mxu0 %v2730
    %3208 = vmatpush.bf16.xpose.msra.mxu0 %v2725
    %3209 = vmatpush.bf16.xpose.msra.mxu0 %v2720
    %3210 = vmatmul.bf16.gmra.mxu0 %v1783
    %v3211 = vpop.f32.mrf.mxu0
    %v3212 = vadd.f32 %v3198, %v3211
    %v3213 = vpop.f32.mrf.mxu0
    %v3214 = vadd.f32 %v3200, %v3213
    %3215 = vdwg.mxu0
    %3216 = vmatpush.bf16.xpose.msra.mxu0 %v2791
    %3217 = vmatpush.bf16.xpose.msra.mxu0 %v2786
    %3218 = vmatpush.bf16.xpose.msra.mxu0 %v2781
    %3219 = vmatpush.bf16.xpose.msra.mxu0 %v2776
    %3220 = vmatpush.bf16.xpose.msra.mxu0 %v2771
    %3221 = vmatpush.bf16.xpose.msra.mxu0 %v2766
    %3222 = vmatpush.bf16.xpose.msra.mxu0 %v2761
    %3223 = vmatpush.bf16.xpose.msra.mxu0 %v2756
    %3224 = vmatmul.bf16.gmra.mxu0 %v1779
    %v3225 = vpop.f32.mrf.mxu0
    %v3226 = vadd.f32 %v2028, %v3225
    %v3227 = vpop.f32.mrf.mxu0
    %v3228 = vadd.f32 %v2028, %v3227
    %3229 = vdwg.mxu0
    %3230 = vmatpush.bf16.xpose.msra.mxu0 %v2792
    %3231 = vmatpush.bf16.xpose.msra.mxu0 %v2787
    %3232 = vmatpush.bf16.xpose.msra.mxu0 %v2782
    %3233 = vmatpush.bf16.xpose.msra.mxu0 %v2777
    %3234 = vmatpush.bf16.xpose.msra.mxu0 %v2772
    %3235 = vmatpush.bf16.xpose.msra.mxu0 %v2767
    %3236 = vmatpush.bf16.xpose.msra.mxu0 %v2762
    %3237 = vmatpush.bf16.xpose.msra.mxu0 %v2757
    %3238 = vmatmul.bf16.gmra.mxu0 %v1780
    %v3239 = vpop.f32.mrf.mxu0
    %v3240 = vadd.f32 %v3226, %v3239
    %v3241 = vpop.f32.mrf.mxu0
    %v3242 = vadd.f32 %v3228, %v3241
    %3243 = vdwg.mxu0
    %3244 = vmatpush.bf16.xpose.msra.mxu0 %v2793
    %3245 = vmatpush.bf16.xpose.msra.mxu0 %v2788
    %3246 = vmatpush.bf16.xpose.msra.mxu0 %v2783
    %3247 = vmatpush.bf16.xpose.msra.mxu0 %v2778
    %3248 = vmatpush.bf16.xpose.msra.mxu0 %v2773
    %3249 = vmatpush.bf16.xpose.msra.mxu0 %v2768
    %3250 = vmatpush.bf16.xpose.msra.mxu0 %v2763
    %3251 = vmatpush.bf16.xpose.msra.mxu0 %v2758
    %3252 = vmatmul.bf16.gmra.mxu0 %v1781
    %v3253 = vpop.f32.mrf.mxu0
    %v3254 = vadd.f32 %v3240, %v3253
    %v3255 = vpop.f32.mrf.mxu0
    %v3256 = vadd.f32 %v3242, %v3255
    %3257 = vdwg.mxu0
    %3258 = vmatpush.bf16.xpose.msra.mxu0 %v2794
    %3259 = vmatpush.bf16.xpose.msra.mxu0 %v2789
    %3260 = vmatpush.bf16.xpose.msra.mxu0 %v2784
    %3261 = vmatpush.bf16.xpose.msra.mxu0 %v2779
    %3262 = vmatpush.bf16.xpose.msra.mxu0 %v2774
    %3263 = vmatpush.bf16.xpose.msra.mxu0 %v2769
    %3264 = vmatpush.bf16.xpose.msra.mxu0 %v2764
    %3265 = vmatpush.bf16.xpose.msra.mxu0 %v2759
    %3266 = vmatmul.bf16.gmra.mxu0 %v1782
    %v3267 = vpop.f32.mrf.mxu0
    %v3268 = vadd.f32 %v3254, %v3267
    %v3269 = vpop.f32.mrf.mxu0
    %v3270 = vadd.f32 %v3256, %v3269
    %3271 = vdwg.mxu0
    %3272 = vmatpush.bf16.xpose.msra.mxu0 %v2795
    %3273 = vmatpush.bf16.xpose.msra.mxu0 %v2790
    %3274 = vmatpush.bf16.xpose.msra.mxu0 %v2785
    %3275 = vmatpush.bf16.xpose.msra.mxu0 %v2780
    %3276 = vmatpush.bf16.xpose.msra.mxu0 %v2775
    %3277 = vmatpush.bf16.xpose.msra.mxu0 %v2770
    %3278 = vmatpush.bf16.xpose.msra.mxu0 %v2765
    %3279 = vmatpush.bf16.xpose.msra.mxu0 %v2760
    %3280 = vmatmul.bf16.gmra.mxu0 %v1783
    %v3281 = vpop.f32.mrf.mxu0
    %v3282 = vadd.f32 %v3268, %v3281
    %v3283 = vpop.f32.mrf.mxu0
    %v3284 = vadd.f32 %v3270, %v3283
    %3285 = vdwg.mxu0
    %3286 = vmatpush.bf16.xpose.msra.mxu0 %v2831
    %3287 = vmatpush.bf16.xpose.msra.mxu0 %v2826
    %3288 = vmatpush.bf16.xpose.msra.mxu0 %v2821
    %3289 = vmatpush.bf16.xpose.msra.mxu0 %v2816
    %3290 = vmatpush.bf16.xpose.msra.mxu0 %v2811
    %3291 = vmatpush.bf16.xpose.msra.mxu0 %v2806
    %3292 = vmatpush.bf16.xpose.msra.mxu0 %v2801
    %3293 = vmatpush.bf16.xpose.msra.mxu0 %v2796
    %3294 = vmatmul.bf16.gmra.mxu0 %v1779
    %v3295 = vpop.f32.mrf.mxu0
    %v3296 = vadd.f32 %v2029, %v3295
    %v3297 = vpop.f32.mrf.mxu0
    %v3298 = vadd.f32 %v2029, %v3297
    %3299 = vdwg.mxu0
    %3300 = vmatpush.bf16.xpose.msra.mxu0 %v2832
    %3301 = vmatpush.bf16.xpose.msra.mxu0 %v2827
    %3302 = vmatpush.bf16.xpose.msra.mxu0 %v2822
    %3303 = vmatpush.bf16.xpose.msra.mxu0 %v2817
    %3304 = vmatpush.bf16.xpose.msra.mxu0 %v2812
    %3305 = vmatpush.bf16.xpose.msra.mxu0 %v2807
    %3306 = vmatpush.bf16.xpose.msra.mxu0 %v2802
    %3307 = vmatpush.bf16.xpose.msra.mxu0 %v2797
    %3308 = vmatmul.bf16.gmra.mxu0 %v1780
    %v3309 = vpop.f32.mrf.mxu0
    %v3310 = vadd.f32 %v3296, %v3309
    %v3311 = vpop.f32.mrf.mxu0
    %v3312 = vadd.f32 %v3298, %v3311
    %3313 = vdwg.mxu0
    %3314 = vmatpush.bf16.xpose.msra.mxu0 %v2833
    %3315 = vmatpush.bf16.xpose.msra.mxu0 %v2828
    %3316 = vmatpush.bf16.xpose.msra.mxu0 %v2823
    %3317 = vmatpush.bf16.xpose.msra.mxu0 %v2818
    %3318 = vmatpush.bf16.xpose.msra.mxu0 %v2813
    %3319 = vmatpush.bf16.xpose.msra.mxu0 %v2808
    %3320 = vmatpush.bf16.xpose.msra.mxu0 %v2803
    %3321 = vmatpush.bf16.xpose.msra.mxu0 %v2798
    %3322 = vmatmul.bf16.gmra.mxu0 %v1781
    %v3323 = vpop.f32.mrf.mxu0
    %v3324 = vadd.f32 %v3310, %v3323
    %v3325 = vpop.f32.mrf.mxu0
    %v3326 = vadd.f32 %v3312, %v3325
    %3327 = vdwg.mxu0
    %3328 = vmatpush.bf16.xpose.msra.mxu0 %v2834
    %3329 = vmatpush.bf16.xpose.msra.mxu0 %v2829
    %3330 = vmatpush.bf16.xpose.msra.mxu0 %v2824
    %3331 = vmatpush.bf16.xpose.msra.mxu0 %v2819
    %3332 = vmatpush.bf16.xpose.msra.mxu0 %v2814
    %3333 = vmatpush.bf16.xpose.msra.mxu0 %v2809
    %3334 = vmatpush.bf16.xpose.msra.mxu0 %v2804
    %3335 = vmatpush.bf16.xpose.msra.mxu0 %v2799
    %3336 = vmatmul.bf16.gmra.mxu0 %v1782
    %v3337 = vpop.f32.mrf.mxu0
    %v3338 = vadd.f32 %v3324, %v3337
    %v3339 = vpop.f32.mrf.mxu0
    %v3340 = vadd.f32 %v3326, %v3339
    %3341 = vdwg.mxu0
    %3342 = vmatpush.bf16.xpose.msra.mxu0 %v2835
    %3343 = vmatpush.bf16.xpose.msra.mxu0 %v2830
    %3344 = vmatpush.bf16.xpose.msra.mxu0 %v2825
    %3345 = vmatpush.bf16.xpose.msra.mxu0 %v2820
    %3346 = vmatpush.bf16.xpose.msra.mxu0 %v2815
    %3347 = vmatpush.bf16.xpose.msra.mxu0 %v2810
    %3348 = vmatpush.bf16.xpose.msra.mxu0 %v2805
    %3349 = vmatpush.bf16.xpose.msra.mxu0 %v2800
    %3350 = vmatmul.bf16.gmra.mxu0 %v1783
    %v3351 = vpop.f32.mrf.mxu0
    %v3352 = vadd.f32 %v3338, %v3351
    %v3353 = vpop.f32.mrf.mxu0
    %v3354 = vadd.f32 %v3340, %v3353
    %3355 = vdwg.mxu0
    %3356 = vmatpush.bf16.xpose.msra.mxu0 %v2871
    %3357 = vmatpush.bf16.xpose.msra.mxu0 %v2866
    %3358 = vmatpush.bf16.xpose.msra.mxu0 %v2861
    %3359 = vmatpush.bf16.xpose.msra.mxu0 %v2856
    %3360 = vmatpush.bf16.xpose.msra.mxu0 %v2851
    %3361 = vmatpush.bf16.xpose.msra.mxu0 %v2846
    %3362 = vmatpush.bf16.xpose.msra.mxu0 %v2841
    %3363 = vmatpush.bf16.xpose.msra.mxu0 %v2836
    %3364 = vmatmul.bf16.gmra.mxu0 %v1779
    %v3365 = vpop.f32.mrf.mxu0
    %v3366 = vadd.f32 %v2030, %v3365
    %v3367 = vpop.f32.mrf.mxu0
    %v3368 = vadd.f32 %v2030, %v3367
    %3369 = vdwg.mxu0
    %3370 = vmatpush.bf16.xpose.msra.mxu0 %v2872
    %3371 = vmatpush.bf16.xpose.msra.mxu0 %v2867
    %3372 = vmatpush.bf16.xpose.msra.mxu0 %v2862
    %3373 = vmatpush.bf16.xpose.msra.mxu0 %v2857
    %3374 = vmatpush.bf16.xpose.msra.mxu0 %v2852
    %3375 = vmatpush.bf16.xpose.msra.mxu0 %v2847
    %3376 = vmatpush.bf16.xpose.msra.mxu0 %v2842
    %3377 = vmatpush.bf16.xpose.msra.mxu0 %v2837
    %3378 = vmatmul.bf16.gmra.mxu0 %v1780
    %v3379 = vpop.f32.mrf.mxu0
    %v3380 = vadd.f32 %v3366, %v3379
    %v3381 = vpop.f32.mrf.mxu0
    %v3382 = vadd.f32 %v3368, %v3381
    %3383 = vdwg.mxu0
    %3384 = vmatpush.bf16.xpose.msra.mxu0 %v2873
    %3385 = vmatpush.bf16.xpose.msra.mxu0 %v2868
    %3386 = vmatpush.bf16.xpose.msra.mxu0 %v2863
    %3387 = vmatpush.bf16.xpose.msra.mxu0 %v2858
    %3388 = vmatpush.bf16.xpose.msra.mxu0 %v2853
    %3389 = vmatpush.bf16.xpose.msra.mxu0 %v2848
    %3390 = vmatpush.bf16.xpose.msra.mxu0 %v2843
    %3391 = vmatpush.bf16.xpose.msra.mxu0 %v2838
    %3392 = vmatmul.bf16.gmra.mxu0 %v1781
    %v3393 = vpop.f32.mrf.mxu0
    %v3394 = vadd.f32 %v3380, %v3393
    %v3395 = vpop.f32.mrf.mxu0
    %v3396 = vadd.f32 %v3382, %v3395
    %3397 = vdwg.mxu0
    %3398 = vmatpush.bf16.xpose.msra.mxu0 %v2874
    %3399 = vmatpush.bf16.xpose.msra.mxu0 %v2869
    %3400 = vmatpush.bf16.xpose.msra.mxu0 %v2864
    %3401 = vmatpush.bf16.xpose.msra.mxu0 %v2859
    %3402 = vmatpush.bf16.xpose.msra.mxu0 %v2854
    %3403 = vmatpush.bf16.xpose.msra.mxu0 %v2849
    %3404 = vmatpush.bf16.xpose.msra.mxu0 %v2844
    %3405 = vmatpush.bf16.xpose.msra.mxu0 %v2839
    %3406 = vmatmul.bf16.gmra.mxu0 %v1782
    %v3407 = vpop.f32.mrf.mxu0
    %v3408 = vadd.f32 %v3394, %v3407
    %v3409 = vpop.f32.mrf.mxu0
    %v3410 = vadd.f32 %v3396, %v3409
    %3411 = vdwg.mxu0
    %3412 = vmatpush.bf16.xpose.msra.mxu0 %v2875
    %3413 = vmatpush.bf16.xpose.msra.mxu0 %v2870
    %3414 = vmatpush.bf16.xpose.msra.mxu0 %v2865
    %3415 = vmatpush.bf16.xpose.msra.mxu0 %v2860
    %3416 = vmatpush.bf16.xpose.msra.mxu0 %v2855
    %3417 = vmatpush.bf16.xpose.msra.mxu0 %v2850
    %3418 = vmatpush.bf16.xpose.msra.mxu0 %v2845
    %3419 = vmatpush.bf16.xpose.msra.mxu0 %v2840
    %3420 = vmatmul.bf16.gmra.mxu0 %v1783
    %v3421 = vpop.f32.mrf.mxu0
    %v3422 = vadd.f32 %v3408, %v3421
    %v3423 = vpop.f32.mrf.mxu0
    %v3424 = vadd.f32 %v3410, %v3423
    %3425 = vdwg.mxu0
    %v3426 = vmax.f32 %v3142, 0.0
    %v3427 = vmax.f32 %v3212, 0.0
    %v3428 = vmax.f32 %v3282, 0.0
    %v3429 = vmax.f32 %v3352, 0.0
    %v3430 = vmax.f32 %v3422, 0.0
    %v3431 = vmax.f32 %v3144, 0.0
    %v3432 = vmax.f32 %v3214, 0.0
    %v3433 = vmax.f32 %v3284, 0.0
    %v3434 = vmax.f32 %v3354, 0.0
    %v3435 = vmax.f32 %v3424, 0.0
    %3436 = vst [vmem:[#allocation11] sm:$0xff] %v3426
    %3437 = vst [vmem:[#allocation11 + $0x8] sm:$0xff] %v3427
    %3438 = vst [vmem:[#allocation11 + $0x10] sm:$0xff] %v3428
    %3439 = vst [vmem:[#allocation11 + $0x18] sm:$0xff] %v3429
    %3440 = vst [vmem:[#allocation11 + $0x20] sm:$0xff] %v3430
    %3441 = vst [vmem:[#allocation11 + $0x28] sm:$0xff] %v3431
    %3442 = vst [vmem:[#allocation11 + $0x30] sm:$0xff] %v3432
    %3443 = vst [vmem:[#allocation11 + $0x38] sm:$0xff] %v3433
    %3444 = vst [vmem:[#allocation11 + $0x40] sm:$0xff] %v3434
    %3445 = vst [vmem:[#allocation11 + $0x48] sm:$0xff] %v3435
    // Predicated region
    $region42: #{tpu_custom_call.1} parent=1 // pred_check
      _
    $region43: #{tpu_custom_call.1} parent=1 // pred_check_branch
      %3447 = sbr.rel (0) target = $region45
    $region44: #{tpu_custom_call.1} parent=1 // pred_region
      %3449 = vsyncadd [#allocation4], 0
      %s3450 = sshll.u32 [#allocation11], 4
      %s3451 = int_to_ptr.vmem [resolvable:$true] %s3450
      %s3452 = sshll.u32 %s5, 4
      %s3453 = int_to_ptr.hbm [resolvable:$true] %s3452
      %3458 = dma.vmem_to_hbm [thread:$0]  %s3451, 1280, %s3453, [#allocation4], 640, 640, 40
    $region45: #{tpu_custom_call.1} parent=1 // pred_fallthru
      _
    // Predicated region
    $region46: #{tpu_custom_call.1} parent=1 // pred_check
      _
    $region47: #{tpu_custom_call.1} parent=1 // pred_check_branch
      %3460 = sbr.rel (0) target = $region49
    $region48: #{tpu_custom_call.1} parent=1 // pred_region
      %3462 = dma.done [#allocation4], 1280
    $region49: #{tpu_custom_call.1} parent=1 // pred_fallthru
      _
    %3463 = vsyncpa [#allocation3], 1
    %3464 = vsyncpa [#allocation6], 1
    %3465 = vsyncpa [#allocation9], 1
    %3466 = vsyncpa [#allocation4], 1

</llo_original>
